<compile_context>
chip_gen: v6e
topology: v6e:2x2x1
jax: 0.10.0
libtpu: 0.0.40
codegen_flags: <defaults>
</compile_context>

<pallas_src>
import functools

import jax
import jax.numpy as jnp
from jax import lax
from jax.experimental import pallas as pl
from jax.experimental.pallas import tpu as pltpu


def _margin_deviance_kernel(xr_ref, xc_ref, trow_ref, tcol_ref, out_ref, *, n_real):
    xr = xr_ref[...]                       # (TM, d) bf16 — row tile
    xc = xc_ref[...]                       # (N,  d) bf16 — full matrix (column operand)
    tm = xr.shape[0]
    n_pad = xc.shape[0]

    # sim[i, j] = <x_i, x_j>  — MXU matmul, bf16 inputs / f32 accumulation.
    sim = lax.dot_general(xr, xc, (((1,), (1,)), ((), ())),
                          preferred_element_type=jnp.float32)       # (TM, N) f32

    t_row = trow_ref[...]                  # (TM, 1) int32
    t_col = tcol_ref[...]                  # (1, N)  int32
    same = t_row == t_col                  # (TM, N)

    row0 = pl.program_id(0) * tm
    row_i = row0 + lax.broadcasted_iota(jnp.int32, (tm, n_pad), 0)   # global row index
    col_j = lax.broadcasted_iota(jnp.int32, (tm, n_pad), 1)
    diag = row_i == col_j

    if n_pad != n_real:                    # static (trace-time) branch
        col_valid = col_j < n_real
        pos_mask = same & (~diag) & col_valid    # same class, off-diagonal, real column
        neg_mask = (~same) & col_valid           # different class, real column
    else:
        pos_mask = same & (~diag)
        neg_mask = ~same

    # Masked per-row sums via selects.
    sim_pos = jnp.where(pos_mask, sim, 0.0)
    sim_neg = jnp.where(neg_mask, sim, 0.0)
    pos_cnt = jnp.sum(pos_mask.astype(jnp.float32), axis=1, keepdims=True)
    neg_cnt = jnp.sum(neg_mask.astype(jnp.float32), axis=1, keepdims=True)
    pos_sum = jnp.sum(sim_pos, axis=1, keepdims=True)
    neg_sum = jnp.sum(sim_neg, axis=1, keepdims=True)
    sq_pos = jnp.sum(sim_pos * sim_pos, axis=1, keepdims=True)
    sq_neg = jnp.sum(sim_neg * sim_neg, axis=1, keepdims=True)

    pos_cnt_s = jnp.maximum(pos_cnt, 1.0)
    neg_cnt_s = jnp.maximum(neg_cnt, 1.0)
    pos_mean = pos_sum / pos_cnt_s
    neg_mean = neg_sum / neg_cnt_s
    # GaussDistribution uses the population std; E[x^2]-E[x]^2 form (sims in [-1,1]).
    pos_std = jnp.sqrt(jnp.maximum(sq_pos / pos_cnt_s - pos_mean * pos_mean, 0.0))
    neg_std = jnp.sqrt(jnp.maximum(sq_neg / neg_cnt_s - neg_mean * neg_mean, 0.0))

    inter = (neg_std * pos_mean + pos_std * neg_mean) / jnp.maximum(pos_std + neg_std, 1e-12)
    inter = 0.8 * inter + 0.1                                        # (TM, 1)

    # Smallest positive similarity of the row (== sorted pos_pair[0]); large finite fill.
    BIG = jnp.float32(3.0e38)
    pos_min = jnp.min(jnp.where(pos_mask, sim, BIG), axis=1, keepdims=True)
    keep = neg_mask & (sim > (pos_min - 0.05))
    keep_cnt = jnp.sum(keep.astype(jnp.float32), axis=1, keepdims=True)

    # Fused, numerically-stable softplus: pos_mask and keep are disjoint, so a single
    # exp+log1p pass covers log1p(exp(-10*(sim-inter))) and log1p(exp(40*(sim-inter))).
    s = sim - inter
    z = jnp.where(pos_mask, -10.0 * s, 40.0 * s)
    sp = jnp.maximum(z, 0.0) + jnp.log1p(jnp.exp(-jnp.abs(z)))

    pos_lsum = jnp.sum(jnp.where(pos_mask, sp, 0.0), axis=1, keepdims=True)
    neg_lsum = jnp.sum(jnp.where(keep, sp, 0.0), axis=1, keepdims=True)

    pos_loss = 0.2 * pos_lsum / pos_cnt_s
    neg_loss = 0.05 * neg_lsum / jnp.maximum(keep_cnt, 1.0)

    has_neg = keep_cnt >= 1.0
    loss_row = jnp.where(has_neg, pos_loss + neg_loss, 0.0)   # rows w/o kept negatives: skipped
    skip_row = jnp.where(has_neg, 0.0, 1.0)                   # contributes to `prec` counter c

    # Single-shot store of the per-row statistics block (no per-column masked stores).
    lane = lax.broadcasted_iota(jnp.int32, (tm, 6), 1)
    blk = jnp.where(lane == 0, loss_row, 0.0)
    blk = jnp.where(lane == 1, skip_row, blk)
    blk = jnp.where(lane == 2, pos_sum, blk)
    blk = jnp.where(lane == 3, pos_cnt, blk)
    blk = jnp.where(lane == 4, neg_sum, blk)
    blk = jnp.where(lane == 5, neg_cnt, blk)
    out_ref[...] = blk


def margin_deviance_loss(inputs, targets, *, tile_m=128,
                         vmem_limit_bytes=48 * 1024 * 1024):
    """Pallas implementation of MarginDevianceLoss.forward.

    Returns (loss, prec, pos_d, neg_d) matching the PyTorch module.
    """
    n, d = inputs.shape

    # Row-tile size: multiple of 8 (sublane), capped by tile_m; pad n up to a multiple.
    tm = max(8, (min(tile_m, ((n + 7) // 8) * 8) // 8) * 8)
    n_pad = ((n + tm - 1) // tm) * tm
    num_tiles = n_pad // tm

    x = inputs.astype(jnp.bfloat16)        # MXU-friendly; matmul accumulates in f32
    t = targets.astype(jnp.int32)
    if n_pad != n:
        x = jnp.pad(x, ((0, n_pad - n), (0, 0)))
        t = jnp.pad(t, (0, n_pad - n), constant_values=-1)
    t_row = t.reshape(n_pad, 1)
    t_col = t.reshape(1, n_pad)

    kernel = functools.partial(_margin_deviance_kernel, n_real=n)

    out = pl.pallas_call(
        kernel,
        out_shape=jax.ShapeDtypeStruct((n_pad, 6), jnp.float32),
        grid=(num_tiles,),
        in_specs=[
            pl.BlockSpec((tm, d), lambda i: (i, 0)),      # row tile of X (pipelined)
            pl.BlockSpec((n_pad, d), lambda i: (0, 0)),   # full X (column operand), fetched once
            pl.BlockSpec((tm, 1), lambda i: (i, 0)),      # row-tile targets
            pl.BlockSpec((1, n_pad), lambda i: (0, 0)),   # full targets as a lane row
        ],
        out_specs=pl.BlockSpec((tm, 6), lambda i: (i, 0)),
        compiler_params=pltpu.CompilerParams(
            dimension_semantics=("parallel",),            # independent row tiles -> megacore
            vmem_limit_bytes=vmem_limit_bytes,
        ),
    )(x, x, t_row, t_col)

    out = out[:n]
    loss = jnp.sum(out[:, 0]) / n
    prec = jnp.sum(out[:, 1]) / n
    pos_d = jnp.sum(out[:, 2]) / jnp.sum(out[:, 3])   # mean of all positive sims
    neg_d = jnp.sum(out[:, 4]) / jnp.sum(out[:, 5])   # mean of all negative sims
    return loss, prec, pos_d, neg_d


if __name__ == "__main__":
    key = jax.random.PRNGKey(0)
    n, d, num_classes = 128, 64, 8                 # batch=128, embedding dim=64
    x = jax.random.normal(key, (n, d), dtype=jnp.float32)
    x = x / jnp.linalg.norm(x, axis=1, keepdims=True)          # L2-normalized embeddings
    targets = jnp.arange(n, dtype=jnp.int32) % num_classes     # balanced: 16 per class

    # tile_m=64 -> a 2-step row-tiled grid (exercises pipelining / parallel axis).
    loss, prec, pos_d, neg_d = margin_deviance_loss(x, targets, tile_m=64)
    jax.block_until_ready((loss, prec, pos_d, neg_d))
    print("KERNEL_OK")
</pallas_src>

<mosaic_0001>
module attributes {stable_mosaic.version = 11 : i64} {
  func.func @_margin_deviance_kernel(%arg0: i32, %arg1: memref<64x64xbf16, #tpu.memory_space<vmem>>, %arg2: memref<128x64xbf16, #tpu.memory_space<vmem>>, %arg3: memref<64x1xi32, #tpu.memory_space<vmem>>, %arg4: memref<1x128xi32, #tpu.memory_space<vmem>>, %arg5: memref<64x6xf32, #tpu.memory_space<vmem>>) attributes {dimension_semantics = [#tpu.dimension_semantics<parallel>], iteration_bounds = array<i64: 2>, scalar_prefetch = 0 : i64, scratch_operands = 0 : i64, tpu.core_type = #tpu.core_type<tc>, window_params = [{transform_indices = @transform_0, window_bounds = array<i64: 64, 64>}, {pipeline_mode = #tpu.pipeline_mode<synchronous>, transform_indices = @transform_1, window_bounds = array<i64: 128, 64>}, {transform_indices = @transform_2, window_bounds = array<i64: 64, 1>}, {pipeline_mode = #tpu.pipeline_mode<synchronous>, transform_indices = @transform_3, window_bounds = array<i64: 1, 128>}, {transform_indices = @transform_4, window_bounds = array<i64: 64, 6>}]} {
    %c0 = arith.constant 0 : index
    %c0_0 = arith.constant 0 : index
    %0 = vector.load %arg1[%c0, %c0_0] : memref<64x64xbf16, #tpu.memory_space<vmem>>, vector<64x64xbf16>
    %c0_1 = arith.constant 0 : index
    %c0_2 = arith.constant 0 : index
    %1 = vector.load %arg2[%c0_1, %c0_2] : memref<128x64xbf16, #tpu.memory_space<vmem>>, vector<128x64xbf16>
    %cst = arith.constant dense<0.000000e+00> : vector<64x128xf32>
    %2 = tpu.matmul %0, %1, %cst {dimension_numbers = #tpu.dot_dimension_numbers<[1], [1], [0], [0], [0, 0, 1, 0], [], []>} : vector<64x64xbf16>, vector<128x64xbf16>, vector<64x128xf32> -> vector<64x128xf32>
    %c0_3 = arith.constant 0 : index
    %c0_4 = arith.constant 0 : index
    %3 = vector.load %arg3[%c0_3, %c0_4] : memref<64x1xi32, #tpu.memory_space<vmem>>, vector<64x1xi32>
    %c0_5 = arith.constant 0 : index
    %c0_6 = arith.constant 0 : index
    %4 = vector.load %arg4[%c0_5, %c0_6] : memref<1x128xi32, #tpu.memory_space<vmem>>, vector<1x128xi32>
    %5 = vector.broadcast %3 : vector<64x1xi32> to vector<64x128xi32>
    %6 = vector.broadcast %4 : vector<1x128xi32> to vector<64x128xi32>
    %7 = arith.cmpi eq, %5, %6 : vector<64x128xi32>
    %c64_i32 = arith.constant 64 : i32
    %8 = arith.muli %arg0, %c64_i32 : i32
    %9 = tpu.iota {dimensions = array<i32: 0>} : vector<64x128xi32>
    %10 = vector.broadcast %8 : i32 to vector<64x128xi32>
    %11 = arith.addi %10, %9 : vector<64x128xi32>
    %12 = tpu.iota {dimensions = array<i32: 1>} : vector<64x128xi32>
    %13 = arith.cmpi eq, %11, %12 : vector<64x128xi32>
    %cst_7 = arith.constant dense<true> : vector<64x128xi1>
    %14 = arith.xori %13, %cst_7 : vector<64x128xi1>
    %15 = arith.andi %7, %14 : vector<64x128xi1>
    %cst_8 = arith.constant dense<true> : vector<64x128xi1>
    %16 = arith.xori %7, %cst_8 : vector<64x128xi1>
    %cst_9 = arith.constant 0.000000e+00 : f32
    %17 = vector.broadcast %cst_9 : f32 to vector<64x128xf32>
    %18 = arith.select %15, %2, %17 : vector<64x128xi1>, vector<64x128xf32>
    %cst_10 = arith.constant 0.000000e+00 : f32
    %19 = vector.broadcast %cst_10 : f32 to vector<64x128xf32>
    %20 = arith.select %16, %2, %19 : vector<64x128xi1>, vector<64x128xf32>
    %21 = arith.extui %15 : vector<64x128xi1> to vector<64x128xi32>
    %22 = arith.sitofp %21 : vector<64x128xi32> to vector<64x128xf32>
    %cst_11 = arith.constant dense<0.000000e+00> : vector<64xf32>
    %23 = vector.multi_reduction <add>, %22, %cst_11 [1] : vector<64x128xf32> to vector<64xf32>
    %24 = vector.shape_cast %23 : vector<64xf32> to vector<64x1xf32>
    %25 = arith.extui %16 : vector<64x128xi1> to vector<64x128xi32>
    %26 = arith.sitofp %25 : vector<64x128xi32> to vector<64x128xf32>
    %cst_12 = arith.constant dense<0.000000e+00> : vector<64xf32>
    %27 = vector.multi_reduction <add>, %26, %cst_12 [1] : vector<64x128xf32> to vector<64xf32>
    %28 = vector.shape_cast %27 : vector<64xf32> to vector<64x1xf32>
    %cst_13 = arith.constant dense<0.000000e+00> : vector<64xf32>
    %29 = vector.multi_reduction <add>, %18, %cst_13 [1] : vector<64x128xf32> to vector<64xf32>
    %30 = vector.shape_cast %29 : vector<64xf32> to vector<64x1xf32>
    %cst_14 = arith.constant dense<0.000000e+00> : vector<64xf32>
    %31 = vector.multi_reduction <add>, %20, %cst_14 [1] : vector<64x128xf32> to vector<64xf32>
    %32 = vector.shape_cast %31 : vector<64xf32> to vector<64x1xf32>
    %33 = arith.mulf %18, %18 : vector<64x128xf32>
    %cst_15 = arith.constant dense<0.000000e+00> : vector<64xf32>
    %34 = vector.multi_reduction <add>, %33, %cst_15 [1] : vector<64x128xf32> to vector<64xf32>
    %35 = vector.shape_cast %34 : vector<64xf32> to vector<64x1xf32>
    %36 = arith.mulf %20, %20 : vector<64x128xf32>
    %cst_16 = arith.constant dense<0.000000e+00> : vector<64xf32>
    %37 = vector.multi_reduction <add>, %36, %cst_16 [1] : vector<64x128xf32> to vector<64xf32>
    %38 = vector.shape_cast %37 : vector<64xf32> to vector<64x1xf32>
    %cst_17 = arith.constant 1.000000e+00 : f32
    %39 = vector.broadcast %cst_17 : f32 to vector<64x1xf32>
    %40 = arith.maximumf %24, %39 : vector<64x1xf32>
    %cst_18 = arith.constant 1.000000e+00 : f32
    %41 = vector.broadcast %cst_18 : f32 to vector<64x1xf32>
    %42 = arith.maximumf %28, %41 : vector<64x1xf32>
    %43 = arith.divf %30, %40 : vector<64x1xf32>
    %44 = arith.divf %32, %42 : vector<64x1xf32>
    %45 = arith.divf %35, %40 : vector<64x1xf32>
    %46 = arith.mulf %43, %43 : vector<64x1xf32>
    %47 = arith.subf %45, %46 : vector<64x1xf32>
    %cst_19 = arith.constant 0.000000e+00 : f32
    %48 = vector.broadcast %cst_19 : f32 to vector<64x1xf32>
    %49 = arith.maximumf %47, %48 : vector<64x1xf32>
    %50 = math.sqrt %49 : vector<64x1xf32>
    %51 = arith.divf %38, %42 : vector<64x1xf32>
    %52 = arith.mulf %44, %44 : vector<64x1xf32>
    %53 = arith.subf %51, %52 : vector<64x1xf32>
    %cst_20 = arith.constant 0.000000e+00 : f32
    %54 = vector.broadcast %cst_20 : f32 to vector<64x1xf32>
    %55 = arith.maximumf %53, %54 : vector<64x1xf32>
    %56 = math.sqrt %55 : vector<64x1xf32>
    %57 = arith.mulf %56, %43 : vector<64x1xf32>
    %58 = arith.mulf %50, %44 : vector<64x1xf32>
    %59 = arith.addf %57, %58 : vector<64x1xf32>
    %60 = arith.addf %50, %56 : vector<64x1xf32>
    %cst_21 = arith.constant 9.99999996E-13 : f32
    %61 = vector.broadcast %cst_21 : f32 to vector<64x1xf32>
    %62 = arith.maximumf %60, %61 : vector<64x1xf32>
    %63 = arith.divf %59, %62 : vector<64x1xf32>
    %cst_22 = arith.constant 8.000000e-01 : f32
    %64 = vector.broadcast %cst_22 : f32 to vector<64x1xf32>
    %65 = arith.mulf %64, %63 : vector<64x1xf32>
    %cst_23 = arith.constant 1.000000e-01 : f32
    %66 = vector.broadcast %cst_23 : f32 to vector<64x1xf32>
    %67 = arith.addf %65, %66 : vector<64x1xf32>
    %cst_24 = arith.constant 3.000000e+38 : f32
    %68 = vector.broadcast %cst_24 : f32 to vector<64x128xf32>
    %69 = arith.select %15, %2, %68 : vector<64x128xi1>, vector<64x128xf32>
    %cst_25 = arith.constant dense<0x7F800000> : vector<64xf32>
    %70 = vector.multi_reduction <minimumf>, %69, %cst_25 [1] : vector<64x128xf32> to vector<64xf32>
    %71 = vector.shape_cast %70 : vector<64xf32> to vector<64x1xf32>
    %cst_26 = arith.constant 5.000000e-02 : f32
    %72 = vector.broadcast %cst_26 : f32 to vector<64x1xf32>
    %73 = arith.subf %71, %72 : vector<64x1xf32>
    %74 = vector.broadcast %73 : vector<64x1xf32> to vector<64x128xf32>
    %75 = arith.cmpf ogt, %2, %74 : vector<64x128xf32>
    %76 = arith.andi %16, %75 : vector<64x128xi1>
    %77 = arith.extui %76 : vector<64x128xi1> to vector<64x128xi32>
    %78 = arith.sitofp %77 : vector<64x128xi32> to vector<64x128xf32>
    %cst_27 = arith.constant dense<0.000000e+00> : vector<64xf32>
    %79 = vector.multi_reduction <add>, %78, %cst_27 [1] : vector<64x128xf32> to vector<64xf32>
    %80 = vector.shape_cast %79 : vector<64xf32> to vector<64x1xf32>
    %81 = vector.broadcast %67 : vector<64x1xf32> to vector<64x128xf32>
    %82 = arith.subf %2, %81 : vector<64x128xf32>
    %cst_28 = arith.constant -1.000000e+01 : f32
    %83 = vector.broadcast %cst_28 : f32 to vector<64x128xf32>
    %84 = arith.mulf %83, %82 : vector<64x128xf32>
    %cst_29 = arith.constant 4.000000e+01 : f32
    %85 = vector.broadcast %cst_29 : f32 to vector<64x128xf32>
    %86 = arith.mulf %85, %82 : vector<64x128xf32>
    %87 = arith.select %15, %84, %86 : vector<64x128xi1>, vector<64x128xf32>
    %cst_30 = arith.constant 0.000000e+00 : f32
    %88 = vector.broadcast %cst_30 : f32 to vector<64x128xf32>
    %89 = arith.maximumf %87, %88 : vector<64x128xf32>
    %90 = math.absf %87 : vector<64x128xf32>
    %cst_31 = arith.constant 0.000000e+00 : f32
    %91 = vector.broadcast %cst_31 : f32 to vector<64x128xf32>
    %92 = arith.subf %91, %90 : vector<64x128xf32>
    %93 = math.exp %92 : vector<64x128xf32>
    %94 = math.log1p %93 : vector<64x128xf32>
    %95 = arith.addf %89, %94 : vector<64x128xf32>
    %cst_32 = arith.constant 0.000000e+00 : f32
    %96 = vector.broadcast %cst_32 : f32 to vector<64x128xf32>
    %97 = arith.select %15, %95, %96 : vector<64x128xi1>, vector<64x128xf32>
    %cst_33 = arith.constant dense<0.000000e+00> : vector<64xf32>
    %98 = vector.multi_reduction <add>, %97, %cst_33 [1] : vector<64x128xf32> to vector<64xf32>
    %99 = vector.shape_cast %98 : vector<64xf32> to vector<64x1xf32>
    %cst_34 = arith.constant 0.000000e+00 : f32
    %100 = vector.broadcast %cst_34 : f32 to vector<64x128xf32>
    %101 = arith.select %76, %95, %100 : vector<64x128xi1>, vector<64x128xf32>
    %cst_35 = arith.constant dense<0.000000e+00> : vector<64xf32>
    %102 = vector.multi_reduction <add>, %101, %cst_35 [1] : vector<64x128xf32> to vector<64xf32>
    %103 = vector.shape_cast %102 : vector<64xf32> to vector<64x1xf32>
    %cst_36 = arith.constant 2.000000e-01 : f32
    %104 = vector.broadcast %cst_36 : f32 to vector<64x1xf32>
    %105 = arith.mulf %104, %99 : vector<64x1xf32>
    %106 = arith.divf %105, %40 : vector<64x1xf32>
    %cst_37 = arith.constant 5.000000e-02 : f32
    %107 = vector.broadcast %cst_37 : f32 to vector<64x1xf32>
    %108 = arith.mulf %107, %103 : vector<64x1xf32>
    %cst_38 = arith.constant 1.000000e+00 : f32
    %109 = vector.broadcast %cst_38 : f32 to vector<64x1xf32>
    %110 = arith.maximumf %80, %109 : vector<64x1xf32>
    %111 = arith.divf %108, %110 : vector<64x1xf32>
    %cst_39 = arith.constant 1.000000e+00 : f32
    %112 = vector.broadcast %cst_39 : f32 to vector<64x1xf32>
    %113 = arith.cmpf oge, %80, %112 : vector<64x1xf32>
    %114 = arith.addf %106, %111 : vector<64x1xf32>
    %cst_40 = arith.constant 0.000000e+00 : f32
    %115 = vector.broadcast %cst_40 : f32 to vector<64x1xf32>
    %116 = arith.select %113, %114, %115 : vector<64x1xi1>, vector<64x1xf32>
    %cst_41 = arith.constant 0.000000e+00 : f32
    %cst_42 = arith.constant 1.000000e+00 : f32
    %117 = vector.broadcast %cst_41 : f32 to vector<64x1xf32>
    %118 = vector.broadcast %cst_42 : f32 to vector<64x1xf32>
    %119 = arith.select %113, %117, %118 : vector<64x1xi1>, vector<64x1xf32>
    %120 = tpu.iota {dimensions = array<i32: 1>} : vector<64x6xi32>
    %c0_i32 = arith.constant 0 : i32
    %121 = vector.broadcast %c0_i32 : i32 to vector<64x6xi32>
    %122 = arith.cmpi eq, %120, %121 : vector<64x6xi32>
    %cst_43 = arith.constant 0.000000e+00 : f32
    %123 = vector.shape_cast %116 : vector<64x1xf32> to vector<64x1xf32>
    %124 = vector.broadcast %123 : vector<64x1xf32> to vector<64x6xf32>
    %125 = vector.broadcast %cst_43 : f32 to vector<64x6xf32>
    %126 = arith.select %122, %124, %125 : vector<64x6xi1>, vector<64x6xf32>
    %c1_i32 = arith.constant 1 : i32
    %127 = vector.broadcast %c1_i32 : i32 to vector<64x6xi32>
    %128 = arith.cmpi eq, %120, %127 : vector<64x6xi32>
    %129 = vector.shape_cast %119 : vector<64x1xf32> to vector<64x1xf32>
    %130 = vector.broadcast %129 : vector<64x1xf32> to vector<64x6xf32>
    %131 = arith.select %128, %130, %126 : vector<64x6xi1>, vector<64x6xf32>
    %c2_i32 = arith.constant 2 : i32
    %132 = vector.broadcast %c2_i32 : i32 to vector<64x6xi32>
    %133 = arith.cmpi eq, %120, %132 : vector<64x6xi32>
    %134 = vector.shape_cast %30 : vector<64x1xf32> to vector<64x1xf32>
    %135 = vector.broadcast %134 : vector<64x1xf32> to vector<64x6xf32>
    %136 = arith.select %133, %135, %131 : vector<64x6xi1>, vector<64x6xf32>
    %c3_i32 = arith.constant 3 : i32
    %137 = vector.broadcast %c3_i32 : i32 to vector<64x6xi32>
    %138 = arith.cmpi eq, %120, %137 : vector<64x6xi32>
    %139 = vector.shape_cast %24 : vector<64x1xf32> to vector<64x1xf32>
    %140 = vector.broadcast %139 : vector<64x1xf32> to vector<64x6xf32>
    %141 = arith.select %138, %140, %136 : vector<64x6xi1>, vector<64x6xf32>
    %c4_i32 = arith.constant 4 : i32
    %142 = vector.broadcast %c4_i32 : i32 to vector<64x6xi32>
    %143 = arith.cmpi eq, %120, %142 : vector<64x6xi32>
    %144 = vector.shape_cast %32 : vector<64x1xf32> to vector<64x1xf32>
    %145 = vector.broadcast %144 : vector<64x1xf32> to vector<64x6xf32>
    %146 = arith.select %143, %145, %141 : vector<64x6xi1>, vector<64x6xf32>
    %c5_i32 = arith.constant 5 : i32
    %147 = vector.broadcast %c5_i32 : i32 to vector<64x6xi32>
    %148 = arith.cmpi eq, %120, %147 : vector<64x6xi32>
    %149 = vector.shape_cast %28 : vector<64x1xf32> to vector<64x1xf32>
    %150 = vector.broadcast %149 : vector<64x1xf32> to vector<64x6xf32>
    %151 = arith.select %148, %150, %146 : vector<64x6xi1>, vector<64x6xf32>
    %c0_44 = arith.constant 0 : index
    %c0_45 = arith.constant 0 : index
    %152 = vector.load %arg5[%c0_44, %c0_45] : memref<64x6xf32, #tpu.memory_space<vmem>>, vector<64x6xf32>
    tpu.vector_store %arg5[%c0_44, %c0_45], %151 {strides = array<i32>} : memref<64x6xf32, #tpu.memory_space<vmem>>, vector<64x6xf32>,
    return
  }
  func.func @transform_0(%arg0: i32) -> (i32, i32) {
    %c0_i32 = arith.constant 0 : i32
    %c0_i32_0 = arith.constant 0 : i32
    return %arg0, %c0_i32 : i32, i32
  }
  func.func @transform_1(%arg0: i32) -> (i32, i32) {
    %c0_i32 = arith.constant 0 : i32
    %c0_i32_0 = arith.constant 0 : i32
    %c0_i32_1 = arith.constant 0 : i32
    return %c0_i32, %c0_i32_0 : i32, i32
  }
  func.func @transform_2(%arg0: i32) -> (i32, i32) {
    %c0_i32 = arith.constant 0 : i32
    %c0_i32_0 = arith.constant 0 : i32
    return %arg0, %c0_i32 : i32, i32
  }
  func.func @transform_3(%arg0: i32) -> (i32, i32) {
    %c0_i32 = arith.constant 0 : i32
    %c0_i32_0 = arith.constant 0 : i32
    %c0_i32_1 = arith.constant 0 : i32
    return %c0_i32, %c0_i32_0 : i32, i32
  }
  func.func @transform_4(%arg0: i32) -> (i32, i32) {
    %c0_i32 = arith.constant 0 : i32
    %c0_i32_0 = arith.constant 0 : i32
    return %arg0, %c0_i32 : i32, i32
  }
}

</mosaic_0001>

<llo_original>
// kernel: tpu_custom_call.1
$region0: #{tpu_custom_call.1}
  #allocation0 [shape = 'u32[]', space=smem, size = 0x4, offset = 0x4, fixed_abs, tag = 'smem constant byte address 0x4 - core index']
  #allocation1 [shape = 'u32[144,128]{1,0:T(1,128)}', space=vmem, size = 0x12000, scoped, tag = 'internal scratch']
  %s0 = inlined_call_operand.vmem [shape: bf16[128,64], index: 0, kind: input, shape index: {}]
  %s1 = inlined_call_operand.vmem [shape: bf16[128,64], index: 1, kind: input, shape index: {}]
  %s2 = inlined_call_operand.vmem [shape: s32[128,1], index: 2, kind: input, shape index: {}]
  %s3 = inlined_call_operand.vmem [shape: s32[1,128], index: 3, kind: input, shape index: {}]
  %s4 = inlined_call_operand.vmem [shape: f32[128,6], index: 4, kind: output, shape index: {}]
  %s5 = sld [smem:[#allocation0]]
  $region49: #{tpu_custom_call.1} parent=0
    _
  %s7 = ssub.s32 1, %s5
  %s8 = scalar_select 0, %s7, %s5
  loop: start=0, step=1, limit=4
  $region2: #{tpu_custom_call.1} parent=0 // loop_pre_header
    _
  $region3: #{tpu_custom_call.1} parent=0 // loop_header
    %s10 = sphi 0, %s14
    %p11 = scmp.ge.s32.totalorder %s10, 4
    %s20 = sphi 0, %s22
    %s23 = sphi 0, %s20
    %s24 = sphi 0, %s23
    %s40 = sphi 0, %s24
    %s44 = sphi 0, %s44
    %s46 = sphi 0, %s44
    %s47 = sphi 0, %s46
    %s61 = sphi 0, %s47
    %s67 = sphi 0, %s69
    %s70 = sphi 0, %s67
    %s71 = sphi 0, %s70
    %s87 = sphi 0, %s71
    %s91 = sphi 0, %s91
    %s93 = sphi 0, %s91
    %s94 = sphi 0, %s93
    %s108 = sphi 0, %s94
    %s114 = sphi 0, %s116
    %s117 = sphi 0, %s114
    %s118 = sphi 0, %s117
    %s134 = sphi 0, %s118
  $region4: #{tpu_custom_call.1} parent=0 // loop_header_branch
    %13 = sbr.rel (%p11) target = $region8
  $region5: #{tpu_custom_call.1} parent=0 // loop_body
    %s15 = ssub.s32 %s10, 1
    %s16 = ssub.s32 %s10, 2
    %s17 = sadd.s32 %s10, 1
    %s18 = ssub.s32 %s10, %s17
    %p19 = scmp.eq.s32.totalorder %s18, 0
    %s21 = sadd.s32 %s20, 1
    %s22 = scalar_select %p19, %s20, %s21
    %p25 = pneg %p19
    %p26 = scmp.eq.s32.totalorder %s10, 1
    %p27 = por %p25, %p26
    %p28 = scmp.ne.s32.totalorder %s20, %s23
    %p29 = scmp.eq.s32.totalorder %s10, 0
    %p30 = por %p28, %p29
    %p31 = scmp.ne.s32.totalorder %s20, %s23
    %p32 = scmp.eq.s32.totalorder %s15, 1
    %p33 = por %p31, %p32
    %p34 = scmp.ne.s32.totalorder %s23, %s24
    %p35 = scmp.eq.s32.totalorder %s15, 0
    %p36 = por %p34, %p35
    %p37 = scmp.ne.s32.totalorder %s23, %s24
    %p38 = scmp.eq.s32.totalorder %s16, 1
    %p39 = por %p37, %p38
    %p41 = scmp.ne.s32.totalorder %s24, %s40
    %p42 = scmp.eq.s32.totalorder %s16, 0
    %p43 = por %p41, %p42
    %s45 = sadd.s32 %s44, 1
    %p48 = scmp.eq.s32.totalorder %s10, 1
    %p49 = scmp.ne.s32.totalorder %s44, %s46
    %p50 = scmp.eq.s32.totalorder %s10, 0
    %p51 = por %p49, %p50
    %p52 = scmp.ne.s32.totalorder %s44, %s46
    %p53 = scmp.eq.s32.totalorder %s15, 1
    %p54 = por %p52, %p53
    %p55 = scmp.ne.s32.totalorder %s46, %s47
    %p56 = scmp.eq.s32.totalorder %s15, 0
    %p57 = por %p55, %p56
    %p58 = scmp.ne.s32.totalorder %s46, %s47
    %p59 = scmp.eq.s32.totalorder %s16, 1
    %p60 = por %p58, %p59
    %p62 = scmp.ne.s32.totalorder %s47, %s61
    %p63 = scmp.eq.s32.totalorder %s16, 0
    %p64 = por %p62, %p63
    %s65 = ssub.s32 %s10, %s17
    %p66 = scmp.eq.s32.totalorder %s65, 0
    %s68 = sadd.s32 %s67, 1
    %s69 = scalar_select %p66, %s67, %s68
    %p72 = pneg %p66
    %p73 = scmp.eq.s32.totalorder %s10, 1
    %p74 = por %p72, %p73
    %p75 = scmp.ne.s32.totalorder %s67, %s70
    %p76 = scmp.eq.s32.totalorder %s10, 0
    %p77 = por %p75, %p76
    %p78 = scmp.ne.s32.totalorder %s67, %s70
    %p79 = scmp.eq.s32.totalorder %s15, 1
    %p80 = por %p78, %p79
    %p81 = scmp.ne.s32.totalorder %s70, %s71
    %p82 = scmp.eq.s32.totalorder %s15, 0
    %p83 = por %p81, %p82
    %p84 = scmp.ne.s32.totalorder %s70, %s71
    %p85 = scmp.eq.s32.totalorder %s16, 1
    %p86 = por %p84, %p85
    %p88 = scmp.ne.s32.totalorder %s71, %s87
    %p89 = scmp.eq.s32.totalorder %s16, 0
    %p90 = por %p88, %p89
    %s92 = sadd.s32 %s91, 1
    %p95 = scmp.eq.s32.totalorder %s10, 1
    %p96 = scmp.ne.s32.totalorder %s91, %s93
    %p97 = scmp.eq.s32.totalorder %s10, 0
    %p98 = por %p96, %p97
    %p99 = scmp.ne.s32.totalorder %s91, %s93
    %p100 = scmp.eq.s32.totalorder %s15, 1
    %p101 = por %p99, %p100
    %p102 = scmp.ne.s32.totalorder %s93, %s94
    %p103 = scmp.eq.s32.totalorder %s15, 0
    %p104 = por %p102, %p103
    %p105 = scmp.ne.s32.totalorder %s93, %s94
    %p106 = scmp.eq.s32.totalorder %s16, 1
    %p107 = por %p105, %p106
    %p109 = scmp.ne.s32.totalorder %s94, %s108
    %p110 = scmp.eq.s32.totalorder %s16, 0
    %p111 = por %p109, %p110
    %s112 = ssub.s32 %s10, %s17
    %p113 = scmp.eq.s32.totalorder %s112, 0
    %s115 = sadd.s32 %s114, 1
    %s116 = scalar_select %p113, %s114, %s115
    %p119 = pneg %p113
    %p120 = scmp.eq.s32.totalorder %s10, 1
    %p121 = por %p119, %p120
    %p122 = scmp.ne.s32.totalorder %s114, %s117
    %p123 = scmp.eq.s32.totalorder %s10, 0
    %p124 = por %p122, %p123
    %p125 = scmp.ne.s32.totalorder %s114, %s117
    %p126 = scmp.eq.s32.totalorder %s15, 1
    %p127 = por %p125, %p126
    %p128 = scmp.ne.s32.totalorder %s117, %s118
    %p129 = scmp.eq.s32.totalorder %s15, 0
    %p130 = por %p128, %p129
    %p131 = scmp.ne.s32.totalorder %s117, %s118
    %p132 = scmp.eq.s32.totalorder %s16, 1
    %p133 = por %p131, %p132
    %p135 = scmp.ne.s32.totalorder %s118, %s134
    %p136 = scmp.eq.s32.totalorder %s16, 0
    %p137 = por %p135, %p136
    %p138 = scmp.le.s32.totalorder 1, %s10
    %p139 = scmp.lt.s32.totalorder %s10, 3
    %p140 = pnand %p138, %p139
    %p141 = pneg %p140
    // Predicated region
    $region9: #{tpu_custom_call.1} parent=5 // pred_check
      _
    $region10: #{tpu_custom_call.1} parent=5 // pred_check_branch
      %143 = sbr.rel (%p140) target = $region12
    $region11: #{tpu_custom_call.1} parent=5 // pred_region
      %s144 = ssub.s32 %s10, 1
      // Predicated region
      $region13: #{tpu_custom_call.1} parent=11 // pred_check
        %p145 = pneg %p57
      $region14: #{tpu_custom_call.1} parent=11 // pred_check_branch
        %147 = sbr.rel (%p145) target = $region16
      $region15: #{tpu_custom_call.1} parent=11 // pred_region
        _
      $region16: #{tpu_custom_call.1} parent=11 // pred_fallthru
        _
      // Predicated region
      $region17: #{tpu_custom_call.1} parent=11 // pred_check
        %p148 = pneg %p104
      $region18: #{tpu_custom_call.1} parent=11 // pred_check_branch
        %150 = sbr.rel (%p148) target = $region20
      $region19: #{tpu_custom_call.1} parent=11 // pred_region
        _
      $region20: #{tpu_custom_call.1} parent=11 // pred_fallthru
        _
    $region12: #{tpu_custom_call.1} parent=5 // pred_fallthru
      _
    %p151 = scmp.lt.s32.totalorder %s10, 2
    // Predicated region
    $region21: #{tpu_custom_call.1} parent=5 // pred_check
      %p152 = pneg %p151
    $region22: #{tpu_custom_call.1} parent=5 // pred_check_branch
      %154 = sbr.rel (%p152) target = $region24
    $region23: #{tpu_custom_call.1} parent=5 // pred_region
      // Predicated region
      $region25: #{tpu_custom_call.1} parent=23 // pred_check
        %p155 = pneg %p30
      $region26: #{tpu_custom_call.1} parent=23 // pred_check_branch
        %157 = sbr.rel (%p155) target = $region28
      $region27: #{tpu_custom_call.1} parent=23 // pred_region
        %s158 = smul.u32 8, %s10
        %p159 = scmp.lt.s32.totalorder %s158, 15
        %s160 = scalar_select %p159, %s158, 15
        %s161 = smul.addr %s160, 4
        %s162 = scalar_lea.vmem %s0, %s161
        %s163 = smul.u32 8, %s10
      $region28: #{tpu_custom_call.1} parent=23 // pred_fallthru
        _
      // Predicated region
      $region29: #{tpu_custom_call.1} parent=23 // pred_check
        %p164 = pneg %p77
      $region30: #{tpu_custom_call.1} parent=23 // pred_check_branch
        %166 = sbr.rel (%p164) target = $region32
      $region31: #{tpu_custom_call.1} parent=23 // pred_region
        %s167 = smul.u32 8, %s10
        %p168 = scmp.lt.s32.totalorder %s167, 15
        %s169 = scalar_select %p168, %s167, 15
        %s170 = smul.addr %s169, 8
        %s171 = scalar_lea.vmem %s2, %s170
        %s172 = smul.u32 8, %s10
      $region32: #{tpu_custom_call.1} parent=23 // pred_fallthru
        _
    $region24: #{tpu_custom_call.1} parent=5 // pred_fallthru
      _
    %p173 = scmp.le.s32.totalorder 1, %s10
    %p174 = scmp.lt.s32.totalorder %s10, 3
    %p175 = pnand %p173, %p174
    %p176 = pneg %p175
    // Predicated region
    $region33: #{tpu_custom_call.1} parent=5 // pred_check
      _
    $region34: #{tpu_custom_call.1} parent=5 // pred_check_branch
      %178 = sbr.rel (%p175) target = $region36
    $region35: #{tpu_custom_call.1} parent=5 // pred_region
      %s179 = ssub.s32 %s10, 1
      %s180 = smul.u32 8, %s15
      %p181 = scmp.lt.s32.totalorder %s180, 15
      %s182 = scalar_select %p181, %s180, 15
      %s183 = smul.addr %s182, 4
      %s184 = scalar_lea.vmem %s0, %s183
      %p185 = pneg %p36
      %p186 = pneg %p33
      %p187 = pneg %p57
      %p188 = pneg %p54
      %s189 = smul.u32 8, %s15
      %p190 = scmp.lt.s32.totalorder %s189, 15
      %s191 = scalar_select %p190, %s189, 15
      %s192 = smul.addr %s191, 8
      %s193 = scalar_lea.vmem %s2, %s192
      %p194 = pneg %p83
      %p195 = pneg %p80
      %p196 = pneg %p104
      %p197 = pneg %p101
      %p198 = pneg %p130
      %p199 = pneg %p127
      %s200 = smul.u32 8, %s15
      %p201 = scmp.lt.s32.totalorder %s200, 15
      %s202 = scalar_select %p201, %s200, 15
      %s203 = smul.addr %s202, 8
      %s204 = scalar_lea.vmem %s4, %s203
      %s205 = smul.u32 8, %s15
      %p206 = scmp.lt.s32.totalorder %s205, 15
      %s207 = scalar_select %p206, %s205, 15
      %s208 = smul.addr %s207, 4
      %s209 = scalar_lea.vmem %s0, %s208
      %s210 = smul.u32 8, %s15
      %s211 = smul.u32 8, %s15
      %p212 = scmp.lt.s32.totalorder %s211, 15
      %s213 = scalar_select %p212, %s211, 15
      %s214 = smul.addr %s213, 8
      %s215 = scalar_lea.vmem %s2, %s214
      %s216 = smul.u32 8, %s15
      %s217 = smul.u32 8, %s15
      %p218 = scmp.lt.s32.totalorder %s217, 15
      %s219 = scalar_select %p218, %s217, 15
      %s220 = smul.addr %s219, 8
      %s221 = scalar_lea.vmem %s4, %s220
      %s222 = smul.u32 8, %s15
      %v224 = vld [vmem:[%s209] sm:$0xf]
      %v225 = vld [vmem:[%s209 + $0x4] sm:$0xf]
      %v226 = vld [vmem:[%s209 + $0x8] sm:$0xf]
      %v227 = vld [vmem:[%s209 + $0xc] sm:$0xf]
      %v228 = vld [vmem:[%s209 + $0x10] sm:$0xf]
      %v229 = vld [vmem:[%s209 + $0x14] sm:$0xf]
      %v230 = vld [vmem:[%s209 + $0x18] sm:$0xf]
      %v231 = vld [vmem:[%s209 + $0x1c] sm:$0xf]
      %v232 = vld [vmem:[%s1] sm:$0xf]
      %v233 = vld [vmem:[%s1 + $0x4] sm:$0xf]
      %v234 = vld [vmem:[%s1 + $0x8] sm:$0xf]
      %v235 = vld [vmem:[%s1 + $0xc] sm:$0xf]
      %v236 = vld [vmem:[%s1 + $0x10] sm:$0xf]
      %v237 = vld [vmem:[%s1 + $0x14] sm:$0xf]
      %v238 = vld [vmem:[%s1 + $0x18] sm:$0xf]
      %v239 = vld [vmem:[%s1 + $0x1c] sm:$0xf]
      %v240 = vld [vmem:[%s1 + $0x20] sm:$0xf]
      %v241 = vld [vmem:[%s1 + $0x24] sm:$0xf]
      %v242 = vld [vmem:[%s1 + $0x28] sm:$0xf]
      %v243 = vld [vmem:[%s1 + $0x2c] sm:$0xf]
      %v244 = vld [vmem:[%s1 + $0x30] sm:$0xf]
      %v245 = vld [vmem:[%s1 + $0x34] sm:$0xf]
      %v246 = vld [vmem:[%s1 + $0x38] sm:$0xf]
      %v247 = vld [vmem:[%s1 + $0x3c] sm:$0xf]
      %v256 = vunpack.c.l.b16 %v224
      %v257 = vunpack.c.l.b16 %v225
      %v258 = vunpack.c.l.b16 %v226
      %v259 = vunpack.c.l.b16 %v227
      %v260 = vunpack.c.l.b16 %v228
      %v261 = vunpack.c.l.b16 %v229
      %v262 = vunpack.c.l.b16 %v230
      %v263 = vunpack.c.l.b16 %v231
      %v264 = vpack.c.b16 %v257, %v256
      %v265 = vpack.c.b16 %v259, %v258
      %v266 = vpack.c.b16 %v261, %v260
      %v267 = vpack.c.b16 %v263, %v262
      %v284 = vunpack.c.l.b16 %v232
      %v285 = vunpack.c.l.b16 %v233
      %v286 = vunpack.c.l.b16 %v234
      %v287 = vunpack.c.l.b16 %v235
      %v288 = vunpack.c.l.b16 %v236
      %v289 = vunpack.c.l.b16 %v237
      %v290 = vunpack.c.l.b16 %v238
      %v291 = vunpack.c.l.b16 %v239
      %v292 = vunpack.c.l.b16 %v240
      %v293 = vunpack.c.l.b16 %v241
      %v294 = vunpack.c.l.b16 %v242
      %v295 = vunpack.c.l.b16 %v243
      %v296 = vunpack.c.l.b16 %v244
      %v297 = vunpack.c.l.b16 %v245
      %v298 = vunpack.c.l.b16 %v246
      %v299 = vunpack.c.l.b16 %v247
      %v300 = vpack.c.b16 %v285, %v284
      %v301 = vpack.c.b16 %v287, %v286
      %v302 = vpack.c.b16 %v289, %v288
      %v303 = vpack.c.b16 %v291, %v290
      %v304 = vpack.c.b16 %v293, %v292
      %v305 = vpack.c.b16 %v295, %v294
      %v306 = vpack.c.b16 %v297, %v296
      %v307 = vpack.c.b16 %v299, %v298
      %vm308 = vcmask 523264
      %v310 = vsel %vm308, %v264, 0
      %v313 = vsel %vm308, %v265, 0
      %v316 = vsel %vm308, %v266, 0
      %v319 = vsel %vm308, %v267, 0
      %v322 = vsel %vm308, %v300, 0
      %v325 = vsel %vm308, %v301, 0
      %v328 = vsel %vm308, %v302, 0
      %v331 = vsel %vm308, %v303, 0
      %v334 = vsel %vm308, %v304, 0
      %v337 = vsel %vm308, %v305, 0
      %v340 = vsel %vm308, %v306, 0
      %v343 = vsel %vm308, %v307, 0
      %345 = vmatprep.subr.bf16.mxu0 0
      %346 = vmatpush1.bf16.xpose.msra.mxu0 %v343
      %347 = vmatprep.subr.bf16.mxu0 0
      %348 = vmatpush1.bf16.xpose.msra.mxu0 %v340
      %349 = vmatprep.subr.bf16.mxu0 0
      %350 = vmatpush1.bf16.xpose.msra.mxu0 %v337
      %351 = vmatprep.subr.bf16.mxu0 0
      %352 = vmatpush1.bf16.xpose.msra.mxu0 %v334
      %353 = vmatprep.subr.bf16.mxu0 0
      %354 = vmatpush1.bf16.xpose.msra.mxu0 %v331
      %355 = vmatprep.subr.bf16.mxu0 0
      %356 = vmatpush1.bf16.xpose.msra.mxu0 %v328
      %357 = vmatprep.subr.bf16.mxu0 0
      %358 = vmatpush1.bf16.xpose.msra.mxu0 %v325
      %359 = vmatprep.subr.bf16.mxu0 0
      %360 = vmatpush1.bf16.xpose.msra.mxu0 %v322
      %361 = vmatprep.subr.bf16.mxu0 0
      %362 = vmatpush2.bf16.xpose.msra.mxu0 0
      %363 = vmatprep.subr.bf16.mxu0 0
      %364 = vmatpush2.bf16.xpose.msra.mxu0 0
      %365 = vmatprep.subr.bf16.mxu0 0
      %366 = vmatpush2.bf16.xpose.msra.mxu0 0
      %367 = vmatprep.subr.bf16.mxu0 0
      %368 = vmatpush2.bf16.xpose.msra.mxu0 0
      %369 = vmatprep.subr.bf16.mxu0 0
      %370 = vmatpush2.bf16.xpose.msra.mxu0 0
      %371 = vmatprep.subr.bf16.mxu0 0
      %372 = vmatpush2.bf16.xpose.msra.mxu0 0
      %373 = vmatprep.subr.bf16.mxu0 0
      %374 = vmatpush2.bf16.xpose.msra.mxu0 0
      %375 = vmatprep.subr.bf16.mxu0 0
      %376 = vmatpush2.bf16.xpose.msra.mxu0 0
      %377 = vmatprep.mubr.bf16.mxu0 0
      %378 = vmatmul.mubr.bf16.gmra.mxu0 %v310
      %v379 = vpop.f32.mrf.mxu0
      %v380 = vadd.f32 0.0, %v379
      %v381 = vpop.f32.mrf.mxu0
      %v382 = vpop.f32.mrf.mxu0
      %v383 = vadd.f32 0.0, %v382
      %v384 = vpop.f32.mrf.mxu0
      %385 = vmatprep.mubr.bf16.mxu0 0
      %386 = vmatmul.mubr.bf16.gmra.mxu0 %v313
      %v387 = vpop.f32.mrf.mxu0
      %v388 = vadd.f32 0.0, %v387
      %v389 = vpop.f32.mrf.mxu0
      %v390 = vpop.f32.mrf.mxu0
      %v391 = vadd.f32 0.0, %v390
      %v392 = vpop.f32.mrf.mxu0
      %393 = vmatprep.mubr.bf16.mxu0 0
      %394 = vmatmul.mubr.bf16.gmra.mxu0 %v316
      %v395 = vpop.f32.mrf.mxu0
      %v396 = vadd.f32 0.0, %v395
      %v397 = vpop.f32.mrf.mxu0
      %v398 = vpop.f32.mrf.mxu0
      %v399 = vadd.f32 0.0, %v398
      %v400 = vpop.f32.mrf.mxu0
      %401 = vmatprep.mubr.bf16.mxu0 0
      %402 = vmatmul.mubr.bf16.gmra.mxu0 %v319
      %v403 = vpop.f32.mrf.mxu0
      %v404 = vadd.f32 0.0, %v403
      %v405 = vpop.f32.mrf.mxu0
      %v406 = vpop.f32.mrf.mxu0
      %v407 = vadd.f32 0.0, %v406
      %v408 = vpop.f32.mrf.mxu0
      %409 = vdwg.mxu0
      %v410 = vld [vmem:[%s215] sm:$0xff]
      %v411 = vld [vmem:[%s215 + $0x8] sm:$0xff]
      %v412 = vld [vmem:[%s215 + $0x10] sm:$0xff]
      %v413 = vld [vmem:[%s215 + $0x18] sm:$0xff]
      %v414 = vld [vmem:[%s215 + $0x20] sm:$0xff]
      %v415 = vld [vmem:[%s215 + $0x28] sm:$0xff]
      %v416 = vld [vmem:[%s215 + $0x30] sm:$0xff]
      %v417 = vld [vmem:[%s215 + $0x38] sm:$0xff]
      %v418 = vld [vmem:[%s3] sm:$0x1]
      %419 = vset.pattern.permute.xlu0 0
      %420 = vperm.xlu0 %419, %v410
      %v421 = vpop.permute.xlu0 %420
      %422 = vset.pattern.permute.xlu0 0
      %423 = vperm.xlu0 %422, %v411
      %v424 = vpop.permute.xlu0 %423
      %425 = vset.pattern.permute.xlu0 0
      %426 = vperm.xlu0 %425, %v412
      %v427 = vpop.permute.xlu0 %426
      %428 = vset.pattern.permute.xlu0 0
      %429 = vperm.xlu0 %428, %v413
      %v430 = vpop.permute.xlu0 %429
      %431 = vset.pattern.permute.xlu0 0
      %432 = vperm.xlu0 %431, %v414
      %v433 = vpop.permute.xlu0 %432
      %434 = vset.pattern.permute.xlu0 0
      %435 = vperm.xlu0 %434, %v415
      %v436 = vpop.permute.xlu0 %435
      %437 = vset.pattern.permute.xlu0 0
      %438 = vperm.xlu0 %437, %v416
      %v439 = vpop.permute.xlu0 %438
      %440 = vset.pattern.permute.xlu0 0
      %441 = vperm.xlu0 %440, %v417
      %v442 = vpop.permute.xlu0 %441
      %v443 = vlaneseq
      %v444 = vshrl.u32 %v443, 7
      %v445 = vsub.s32 0, %v444
      %v446 = vrot.slane %v418, %v445
      %vm447 = vcmp.eq.s32.totalorder %v421, %v446
      %vm448 = vcmp.eq.s32.totalorder %v424, %v446
      %vm449 = vcmp.eq.s32.totalorder %v427, %v446
      %vm450 = vcmp.eq.s32.totalorder %v430, %v446
      %vm451 = vcmp.eq.s32.totalorder %v433, %v446
      %vm452 = vcmp.eq.s32.totalorder %v436, %v446
      %vm453 = vcmp.eq.s32.totalorder %v439, %v446
      %vm454 = vcmp.eq.s32.totalorder %v442, %v446
      %s455 = smul.u32 %s15, 64
      %v456 = vlaneseq
      %v457 = vshrl.u32 %v456, 7
      %v458 = vadd.s32 %v457, 8
      %v459 = vadd.s32 %v457, 16
      %v460 = vadd.s32 %v457, 24
      %v461 = vadd.s32 %v457, 32
      %v462 = vadd.s32 %v457, 40
      %v463 = vadd.s32 %v457, 48
      %v464 = vadd.s32 %v457, 56
      %v465 = vstv %s455
      %v466 = vadd.s32 %v465, %v457
      %v467 = vadd.s32 %v465, %v458
      %v468 = vadd.s32 %v465, %v459
      %v469 = vadd.s32 %v465, %v460
      %v470 = vadd.s32 %v465, %v461
      %v471 = vadd.s32 %v465, %v462
      %v472 = vadd.s32 %v465, %v463
      %v473 = vadd.s32 %v465, %v464
      %v474 = vlaneseq
      %v475 = vand.u32 %v474, 127
      %vm476 = vcmp.eq.s32.totalorder %v466, %v475
      %vm477 = vcmp.eq.s32.totalorder %v467, %v475
      %vm478 = vcmp.eq.s32.totalorder %v468, %v475
      %vm479 = vcmp.eq.s32.totalorder %v469, %v475
      %vm480 = vcmp.eq.s32.totalorder %v470, %v475
      %vm481 = vcmp.eq.s32.totalorder %v471, %v475
      %vm482 = vcmp.eq.s32.totalorder %v472, %v475
      %vm483 = vcmp.eq.s32.totalorder %v473, %v475
      %vm484 = vmxor %vm476, 1
      %vm485 = vmxor %vm477, 1
      %vm486 = vmxor %vm478, 1
      %vm487 = vmxor %vm479, 1
      %vm488 = vmxor %vm480, 1
      %vm489 = vmxor %vm481, 1
      %vm490 = vmxor %vm482, 1
      %vm491 = vmxor %vm483, 1
      %vm492 = vmand %vm447, %vm484
      %vm493 = vmand %vm448, %vm485
      %vm494 = vmand %vm449, %vm486
      %vm495 = vmand %vm450, %vm487
      %vm496 = vmand %vm451, %vm488
      %vm497 = vmand %vm452, %vm489
      %vm498 = vmand %vm453, %vm490
      %vm499 = vmand %vm454, %vm491
      %vm500 = vmxor %vm447, 1
      %vm501 = vmxor %vm448, 1
      %vm502 = vmxor %vm449, 1
      %vm503 = vmxor %vm450, 1
      %vm504 = vmxor %vm451, 1
      %vm505 = vmxor %vm452, 1
      %vm506 = vmxor %vm453, 1
      %vm507 = vmxor %vm454, 1
      %v508 = vsel %vm492, %v380, 0.0
      %v509 = vsel %vm493, %v383, 0.0
      %v510 = vsel %vm494, %v388, 0.0
      %v511 = vsel %vm495, %v391, 0.0
      %v512 = vsel %vm496, %v396, 0.0
      %v513 = vsel %vm497, %v399, 0.0
      %v514 = vsel %vm498, %v404, 0.0
      %v515 = vsel %vm499, %v407, 0.0
      %v516 = vsel %vm500, %v380, 0.0
      %v517 = vsel %vm501, %v383, 0.0
      %v518 = vsel %vm502, %v388, 0.0
      %v519 = vsel %vm503, %v391, 0.0
      %v520 = vsel %vm504, %v396, 0.0
      %v521 = vsel %vm505, %v399, 0.0
      %v522 = vsel %vm506, %v404, 0.0
      %v523 = vsel %vm507, %v407, 0.0
      %v524 = vsel %vm492, 1, 0
      %v525 = vsel %vm493, 1, 0
      %v526 = vsel %vm494, 1, 0
      %v527 = vsel %vm495, 1, 0
      %v528 = vsel %vm496, 1, 0
      %v529 = vsel %vm497, 1, 0
      %v530 = vsel %vm498, 1, 0
      %v531 = vsel %vm499, 1, 0
      %v532 = vcvt.s32.f32 %v524
      %v533 = vcvt.s32.f32 %v525
      %v534 = vcvt.s32.f32 %v526
      %v535 = vcvt.s32.f32 %v527
      %v536 = vcvt.s32.f32 %v528
      %v537 = vcvt.s32.f32 %v529
      %v538 = vcvt.s32.f32 %v530
      %v539 = vcvt.s32.f32 %v531
      %540 = vadd.xlane.f32.xlu0 %v532
      %v541 = vpop.xlane.xlu0 %540
      %542 = vadd.xlane.f32.xlu0 %v533
      %v543 = vpop.xlane.xlu0 %542
      %544 = vadd.xlane.f32.xlu0 %v534
      %v545 = vpop.xlane.xlu0 %544
      %546 = vadd.xlane.f32.xlu0 %v535
      %v547 = vpop.xlane.xlu0 %546
      %548 = vadd.xlane.f32.xlu0 %v536
      %v549 = vpop.xlane.xlu0 %548
      %550 = vadd.xlane.f32.xlu0 %v537
      %v551 = vpop.xlane.xlu0 %550
      %552 = vadd.xlane.f32.xlu0 %v538
      %v553 = vpop.xlane.xlu0 %552
      %554 = vadd.xlane.f32.xlu0 %v539
      %v555 = vpop.xlane.xlu0 %554
      %v556 = vsel %vm500, 1, 0
      %v557 = vsel %vm501, 1, 0
      %v558 = vsel %vm502, 1, 0
      %v559 = vsel %vm503, 1, 0
      %v560 = vsel %vm504, 1, 0
      %v561 = vsel %vm505, 1, 0
      %v562 = vsel %vm506, 1, 0
      %v563 = vsel %vm507, 1, 0
      %v564 = vcvt.s32.f32 %v556
      %v565 = vcvt.s32.f32 %v557
      %v566 = vcvt.s32.f32 %v558
      %v567 = vcvt.s32.f32 %v559
      %v568 = vcvt.s32.f32 %v560
      %v569 = vcvt.s32.f32 %v561
      %v570 = vcvt.s32.f32 %v562
      %v571 = vcvt.s32.f32 %v563
      %572 = vadd.xlane.f32.xlu0 %v564
      %v573 = vpop.xlane.xlu0 %572
      %574 = vadd.xlane.f32.xlu0 %v565
      %v575 = vpop.xlane.xlu0 %574
      %576 = vadd.xlane.f32.xlu0 %v566
      %v577 = vpop.xlane.xlu0 %576
      %578 = vadd.xlane.f32.xlu0 %v567
      %v579 = vpop.xlane.xlu0 %578
      %580 = vadd.xlane.f32.xlu0 %v568
      %v581 = vpop.xlane.xlu0 %580
      %582 = vadd.xlane.f32.xlu0 %v569
      %v583 = vpop.xlane.xlu0 %582
      %584 = vadd.xlane.f32.xlu0 %v570
      %v585 = vpop.xlane.xlu0 %584
      %586 = vadd.xlane.f32.xlu0 %v571
      %v587 = vpop.xlane.xlu0 %586
      %588 = vadd.xlane.f32.xlu0 %v508
      %v589 = vpop.xlane.xlu0 %588
      %590 = vadd.xlane.f32.xlu0 %v509
      %v591 = vpop.xlane.xlu0 %590
      %592 = vadd.xlane.f32.xlu0 %v510
      %v593 = vpop.xlane.xlu0 %592
      %594 = vadd.xlane.f32.xlu0 %v511
      %v595 = vpop.xlane.xlu0 %594
      %596 = vadd.xlane.f32.xlu0 %v512
      %v597 = vpop.xlane.xlu0 %596
      %598 = vadd.xlane.f32.xlu0 %v513
      %v599 = vpop.xlane.xlu0 %598
      %600 = vadd.xlane.f32.xlu0 %v514
      %v601 = vpop.xlane.xlu0 %600
      %602 = vadd.xlane.f32.xlu0 %v515
      %v603 = vpop.xlane.xlu0 %602
      %604 = vadd.xlane.f32.xlu0 %v516
      %v605 = vpop.xlane.xlu0 %604
      %606 = vadd.xlane.f32.xlu0 %v517
      %v607 = vpop.xlane.xlu0 %606
      %608 = vadd.xlane.f32.xlu0 %v518
      %v609 = vpop.xlane.xlu0 %608
      %610 = vadd.xlane.f32.xlu0 %v519
      %v611 = vpop.xlane.xlu0 %610
      %612 = vadd.xlane.f32.xlu0 %v520
      %v613 = vpop.xlane.xlu0 %612
      %614 = vadd.xlane.f32.xlu0 %v521
      %v615 = vpop.xlane.xlu0 %614
      %616 = vadd.xlane.f32.xlu0 %v522
      %v617 = vpop.xlane.xlu0 %616
      %618 = vadd.xlane.f32.xlu0 %v523
      %v619 = vpop.xlane.xlu0 %618
      %v620 = vmul.f32 %v508, %v508
      %v621 = vmul.f32 %v509, %v509
      %v622 = vmul.f32 %v510, %v510
      %v623 = vmul.f32 %v511, %v511
      %v624 = vmul.f32 %v512, %v512
      %v625 = vmul.f32 %v513, %v513
      %v626 = vmul.f32 %v514, %v514
      %v627 = vmul.f32 %v515, %v515
      %628 = vadd.xlane.f32.xlu0 %v620
      %v629 = vpop.xlane.xlu0 %628
      %630 = vadd.xlane.f32.xlu0 %v621
      %v631 = vpop.xlane.xlu0 %630
      %632 = vadd.xlane.f32.xlu0 %v622
      %v633 = vpop.xlane.xlu0 %632
      %634 = vadd.xlane.f32.xlu0 %v623
      %v635 = vpop.xlane.xlu0 %634
      %636 = vadd.xlane.f32.xlu0 %v624
      %v637 = vpop.xlane.xlu0 %636
      %638 = vadd.xlane.f32.xlu0 %v625
      %v639 = vpop.xlane.xlu0 %638
      %640 = vadd.xlane.f32.xlu0 %v626
      %v641 = vpop.xlane.xlu0 %640
      %642 = vadd.xlane.f32.xlu0 %v627
      %v643 = vpop.xlane.xlu0 %642
      %v644 = vmul.f32 %v516, %v516
      %v645 = vmul.f32 %v517, %v517
      %v646 = vmul.f32 %v518, %v518
      %v647 = vmul.f32 %v519, %v519
      %v648 = vmul.f32 %v520, %v520
      %v649 = vmul.f32 %v521, %v521
      %v650 = vmul.f32 %v522, %v522
      %v651 = vmul.f32 %v523, %v523
      %652 = vadd.xlane.f32.xlu0 %v644
      %v653 = vpop.xlane.xlu0 %652
      %654 = vadd.xlane.f32.xlu0 %v645
      %v655 = vpop.xlane.xlu0 %654
      %656 = vadd.xlane.f32.xlu0 %v646
      %v657 = vpop.xlane.xlu0 %656
      %658 = vadd.xlane.f32.xlu0 %v647
      %v659 = vpop.xlane.xlu0 %658
      %660 = vadd.xlane.f32.xlu0 %v648
      %v661 = vpop.xlane.xlu0 %660
      %662 = vadd.xlane.f32.xlu0 %v649
      %v663 = vpop.xlane.xlu0 %662
      %664 = vadd.xlane.f32.xlu0 %v650
      %v665 = vpop.xlane.xlu0 %664
      %666 = vadd.xlane.f32.xlu0 %v651
      %v667 = vpop.xlane.xlu0 %666
      %v668 = vmax.f32 %v541, 1.0
      %v669 = vmax.f32 %v543, 1.0
      %v670 = vmax.f32 %v545, 1.0
      %v671 = vmax.f32 %v547, 1.0
      %v672 = vmax.f32 %v549, 1.0
      %v673 = vmax.f32 %v551, 1.0
      %v674 = vmax.f32 %v553, 1.0
      %v675 = vmax.f32 %v555, 1.0
      %v676 = vmax.f32 %v573, 1.0
      %v677 = vmax.f32 %v575, 1.0
      %v678 = vmax.f32 %v577, 1.0
      %v679 = vmax.f32 %v579, 1.0
      %v680 = vmax.f32 %v581, 1.0
      %v681 = vmax.f32 %v583, 1.0
      %v682 = vmax.f32 %v585, 1.0
      %v683 = vmax.f32 %v587, 1.0
      %v684 = vrcp.pop %v668
      %v685 = vmul.f32 %v589, %v684
      %v686 = vrcp.pop %v669
      %v687 = vmul.f32 %v591, %v686
      %v688 = vrcp.pop %v670
      %v689 = vmul.f32 %v593, %v688
      %v690 = vrcp.pop %v671
      %v691 = vmul.f32 %v595, %v690
      %v692 = vrcp.pop %v672
      %v693 = vmul.f32 %v597, %v692
      %v694 = vrcp.pop %v673
      %v695 = vmul.f32 %v599, %v694
      %v696 = vrcp.pop %v674
      %v697 = vmul.f32 %v601, %v696
      %v698 = vrcp.pop %v675
      %v699 = vmul.f32 %v603, %v698
      %v700 = vrcp.pop %v676
      %v701 = vmul.f32 %v605, %v700
      %v702 = vrcp.pop %v677
      %v703 = vmul.f32 %v607, %v702
      %v704 = vrcp.pop %v678
      %v705 = vmul.f32 %v609, %v704
      %v706 = vrcp.pop %v679
      %v707 = vmul.f32 %v611, %v706
      %v708 = vrcp.pop %v680
      %v709 = vmul.f32 %v613, %v708
      %v710 = vrcp.pop %v681
      %v711 = vmul.f32 %v615, %v710
      %v712 = vrcp.pop %v682
      %v713 = vmul.f32 %v617, %v712
      %v714 = vrcp.pop %v683
      %v715 = vmul.f32 %v619, %v714
      %v716 = vmul.f32 %v629, %v684
      %v717 = vmul.f32 %v631, %v686
      %v718 = vmul.f32 %v633, %v688
      %v719 = vmul.f32 %v635, %v690
      %v720 = vmul.f32 %v637, %v692
      %v721 = vmul.f32 %v639, %v694
      %v722 = vmul.f32 %v641, %v696
      %v723 = vmul.f32 %v643, %v698
      %v724 = vmul.f32 %v685, %v685
      %v725 = vmul.f32 %v687, %v687
      %v726 = vmul.f32 %v689, %v689
      %v727 = vmul.f32 %v691, %v691
      %v728 = vmul.f32 %v693, %v693
      %v729 = vmul.f32 %v695, %v695
      %v730 = vmul.f32 %v697, %v697
      %v731 = vmul.f32 %v699, %v699
      %v732 = vsub.f32 %v716, %v724
      %v733 = vsub.f32 %v717, %v725
      %v734 = vsub.f32 %v718, %v726
      %v735 = vsub.f32 %v719, %v727
      %v736 = vsub.f32 %v720, %v728
      %v737 = vsub.f32 %v721, %v729
      %v738 = vsub.f32 %v722, %v730
      %v739 = vsub.f32 %v723, %v731
      %v740 = vmax.f32 %v732, 0.0
      %v741 = vmax.f32 %v733, 0.0
      %v742 = vmax.f32 %v734, 0.0
      %v743 = vmax.f32 %v735, 0.0
      %v744 = vmax.f32 %v736, 0.0
      %v745 = vmax.f32 %v737, 0.0
      %v746 = vmax.f32 %v738, 0.0
      %v747 = vmax.f32 %v739, 0.0
      %v748 = vrsqrt.pop %v740
      %v749 = vmul.f32 %v740, %v748
      %vm750 = vcmp.eq.f32.partialorder %v740, inf
      %v751 = vsel %vm750, %v740, %v749
      %vm752 = vcmp.eq.f32.partialorder %v740, 0.0
      %v753 = vand.u32 %v740, 2147483648
      %v754 = vsel %vm752, %v753, %v751
      %v755 = vrsqrt.pop %v741
      %v756 = vmul.f32 %v741, %v755
      %vm757 = vcmp.eq.f32.partialorder %v741, inf
      %v758 = vsel %vm757, %v741, %v756
      %vm759 = vcmp.eq.f32.partialorder %v741, 0.0
      %v760 = vand.u32 %v741, 2147483648
      %v761 = vsel %vm759, %v760, %v758
      %v762 = vrsqrt.pop %v742
      %v763 = vmul.f32 %v742, %v762
      %vm764 = vcmp.eq.f32.partialorder %v742, inf
      %v765 = vsel %vm764, %v742, %v763
      %vm766 = vcmp.eq.f32.partialorder %v742, 0.0
      %v767 = vand.u32 %v742, 2147483648
      %v768 = vsel %vm766, %v767, %v765
      %v769 = vrsqrt.pop %v743
      %v770 = vmul.f32 %v743, %v769
      %vm771 = vcmp.eq.f32.partialorder %v743, inf
      %v772 = vsel %vm771, %v743, %v770
      %vm773 = vcmp.eq.f32.partialorder %v743, 0.0
      %v774 = vand.u32 %v743, 2147483648
      %v775 = vsel %vm773, %v774, %v772
      %v776 = vrsqrt.pop %v744
      %v777 = vmul.f32 %v744, %v776
      %vm778 = vcmp.eq.f32.partialorder %v744, inf
      %v779 = vsel %vm778, %v744, %v777
      %vm780 = vcmp.eq.f32.partialorder %v744, 0.0
      %v781 = vand.u32 %v744, 2147483648
      %v782 = vsel %vm780, %v781, %v779
      %v783 = vrsqrt.pop %v745
      %v784 = vmul.f32 %v745, %v783
      %vm785 = vcmp.eq.f32.partialorder %v745, inf
      %v786 = vsel %vm785, %v745, %v784
      %vm787 = vcmp.eq.f32.partialorder %v745, 0.0
      %v788 = vand.u32 %v745, 2147483648
      %v789 = vsel %vm787, %v788, %v786
      %v790 = vrsqrt.pop %v746
      %v791 = vmul.f32 %v746, %v790
      %vm792 = vcmp.eq.f32.partialorder %v746, inf
      %v793 = vsel %vm792, %v746, %v791
      %vm794 = vcmp.eq.f32.partialorder %v746, 0.0
      %v795 = vand.u32 %v746, 2147483648
      %v796 = vsel %vm794, %v795, %v793
      %v797 = vrsqrt.pop %v747
      %v798 = vmul.f32 %v747, %v797
      %vm799 = vcmp.eq.f32.partialorder %v747, inf
      %v800 = vsel %vm799, %v747, %v798
      %vm801 = vcmp.eq.f32.partialorder %v747, 0.0
      %v802 = vand.u32 %v747, 2147483648
      %v803 = vsel %vm801, %v802, %v800
      %v804 = vmul.f32 %v653, %v700
      %v805 = vmul.f32 %v655, %v702
      %v806 = vmul.f32 %v657, %v704
      %v807 = vmul.f32 %v659, %v706
      %v808 = vmul.f32 %v661, %v708
      %v809 = vmul.f32 %v663, %v710
      %v810 = vmul.f32 %v665, %v712
      %v811 = vmul.f32 %v667, %v714
      %v812 = vmul.f32 %v701, %v701
      %v813 = vmul.f32 %v703, %v703
      %v814 = vmul.f32 %v705, %v705
      %v815 = vmul.f32 %v707, %v707
      %v816 = vmul.f32 %v709, %v709
      %v817 = vmul.f32 %v711, %v711
      %v818 = vmul.f32 %v713, %v713
      %v819 = vmul.f32 %v715, %v715
      %v820 = vsub.f32 %v804, %v812
      %v821 = vsub.f32 %v805, %v813
      %v822 = vsub.f32 %v806, %v814
      %v823 = vsub.f32 %v807, %v815
      %v824 = vsub.f32 %v808, %v816
      %v825 = vsub.f32 %v809, %v817
      %v826 = vsub.f32 %v810, %v818
      %v827 = vsub.f32 %v811, %v819
      %v828 = vmax.f32 %v820, 0.0
      %v829 = vmax.f32 %v821, 0.0
      %v830 = vmax.f32 %v822, 0.0
      %v831 = vmax.f32 %v823, 0.0
      %v832 = vmax.f32 %v824, 0.0
      %v833 = vmax.f32 %v825, 0.0
      %v834 = vmax.f32 %v826, 0.0
      %v835 = vmax.f32 %v827, 0.0
      %v836 = vrsqrt.pop %v828
      %v837 = vmul.f32 %v828, %v836
      %vm838 = vcmp.eq.f32.partialorder %v828, inf
      %v839 = vsel %vm838, %v828, %v837
      %vm840 = vcmp.eq.f32.partialorder %v828, 0.0
      %v841 = vand.u32 %v828, 2147483648
      %v842 = vsel %vm840, %v841, %v839
      %v843 = vrsqrt.pop %v829
      %v844 = vmul.f32 %v829, %v843
      %vm845 = vcmp.eq.f32.partialorder %v829, inf
      %v846 = vsel %vm845, %v829, %v844
      %vm847 = vcmp.eq.f32.partialorder %v829, 0.0
      %v848 = vand.u32 %v829, 2147483648
      %v849 = vsel %vm847, %v848, %v846
      %v850 = vrsqrt.pop %v830
      %v851 = vmul.f32 %v830, %v850
      %vm852 = vcmp.eq.f32.partialorder %v830, inf
      %v853 = vsel %vm852, %v830, %v851
      %vm854 = vcmp.eq.f32.partialorder %v830, 0.0
      %v855 = vand.u32 %v830, 2147483648
      %v856 = vsel %vm854, %v855, %v853
      %v857 = vrsqrt.pop %v831
      %v858 = vmul.f32 %v831, %v857
      %vm859 = vcmp.eq.f32.partialorder %v831, inf
      %v860 = vsel %vm859, %v831, %v858
      %vm861 = vcmp.eq.f32.partialorder %v831, 0.0
      %v862 = vand.u32 %v831, 2147483648
      %v863 = vsel %vm861, %v862, %v860
      %v864 = vrsqrt.pop %v832
      %v865 = vmul.f32 %v832, %v864
      %vm866 = vcmp.eq.f32.partialorder %v832, inf
      %v867 = vsel %vm866, %v832, %v865
      %vm868 = vcmp.eq.f32.partialorder %v832, 0.0
      %v869 = vand.u32 %v832, 2147483648
      %v870 = vsel %vm868, %v869, %v867
      %v871 = vrsqrt.pop %v833
      %v872 = vmul.f32 %v833, %v871
      %vm873 = vcmp.eq.f32.partialorder %v833, inf
      %v874 = vsel %vm873, %v833, %v872
      %vm875 = vcmp.eq.f32.partialorder %v833, 0.0
      %v876 = vand.u32 %v833, 2147483648
      %v877 = vsel %vm875, %v876, %v874
      %v878 = vrsqrt.pop %v834
      %v879 = vmul.f32 %v834, %v878
      %vm880 = vcmp.eq.f32.partialorder %v834, inf
      %v881 = vsel %vm880, %v834, %v879
      %vm882 = vcmp.eq.f32.partialorder %v834, 0.0
      %v883 = vand.u32 %v834, 2147483648
      %v884 = vsel %vm882, %v883, %v881
      %v885 = vrsqrt.pop %v835
      %v886 = vmul.f32 %v835, %v885
      %vm887 = vcmp.eq.f32.partialorder %v835, inf
      %v888 = vsel %vm887, %v835, %v886
      %vm889 = vcmp.eq.f32.partialorder %v835, 0.0
      %v890 = vand.u32 %v835, 2147483648
      %v891 = vsel %vm889, %v890, %v888
      %v892 = vmul.f32 %v842, %v685
      %v893 = vmul.f32 %v849, %v687
      %v894 = vmul.f32 %v856, %v689
      %v895 = vmul.f32 %v863, %v691
      %v896 = vmul.f32 %v870, %v693
      %v897 = vmul.f32 %v877, %v695
      %v898 = vmul.f32 %v884, %v697
      %v899 = vmul.f32 %v891, %v699
      %v900 = vmul.f32 %v754, %v701
      %v901 = vmul.f32 %v761, %v703
      %v902 = vmul.f32 %v768, %v705
      %v903 = vmul.f32 %v775, %v707
      %v904 = vmul.f32 %v782, %v709
      %v905 = vmul.f32 %v789, %v711
      %v906 = vmul.f32 %v796, %v713
      %v907 = vmul.f32 %v803, %v715
      %v908 = vadd.f32 %v892, %v900
      %v909 = vadd.f32 %v893, %v901
      %v910 = vadd.f32 %v894, %v902
      %v911 = vadd.f32 %v895, %v903
      %v912 = vadd.f32 %v896, %v904
      %v913 = vadd.f32 %v897, %v905
      %v914 = vadd.f32 %v898, %v906
      %v915 = vadd.f32 %v899, %v907
      %v916 = vadd.f32 %v754, %v842
      %v917 = vadd.f32 %v761, %v849
      %v918 = vadd.f32 %v768, %v856
      %v919 = vadd.f32 %v775, %v863
      %v920 = vadd.f32 %v782, %v870
      %v921 = vadd.f32 %v789, %v877
      %v922 = vadd.f32 %v796, %v884
      %v923 = vadd.f32 %v803, %v891
      %v924 = vmax.f32 %v916, 1e-12
      %v925 = vmax.f32 %v917, 1e-12
      %v926 = vmax.f32 %v918, 1e-12
      %v927 = vmax.f32 %v919, 1e-12
      %v928 = vmax.f32 %v920, 1e-12
      %v929 = vmax.f32 %v921, 1e-12
      %v930 = vmax.f32 %v922, 1e-12
      %v931 = vmax.f32 %v923, 1e-12
      %v932 = vrcp.pop %v924
      %v933 = vmul.f32 %v908, %v932
      %v934 = vrcp.pop %v925
      %v935 = vmul.f32 %v909, %v934
      %v936 = vrcp.pop %v926
      %v937 = vmul.f32 %v910, %v936
      %v938 = vrcp.pop %v927
      %v939 = vmul.f32 %v911, %v938
      %v940 = vrcp.pop %v928
      %v941 = vmul.f32 %v912, %v940
      %v942 = vrcp.pop %v929
      %v943 = vmul.f32 %v913, %v942
      %v944 = vrcp.pop %v930
      %v945 = vmul.f32 %v914, %v944
      %v946 = vrcp.pop %v931
      %v947 = vmul.f32 %v915, %v946
      %v948 = vmul.f32 %v933, 0.8
      %v949 = vmul.f32 %v935, 0.8
      %v950 = vmul.f32 %v937, 0.8
      %v951 = vmul.f32 %v939, 0.8
      %v952 = vmul.f32 %v941, 0.8
      %v953 = vmul.f32 %v943, 0.8
      %v954 = vmul.f32 %v945, 0.8
      %v955 = vmul.f32 %v947, 0.8
      %v956 = vadd.f32 %v948, 0.1
      %v957 = vadd.f32 %v949, 0.1
      %v958 = vadd.f32 %v950, 0.1
      %v959 = vadd.f32 %v951, 0.1
      %v960 = vadd.f32 %v952, 0.1
      %v961 = vadd.f32 %v953, 0.1
      %v962 = vadd.f32 %v954, 0.1
      %v963 = vadd.f32 %v955, 0.1
      %v964 = vsel %vm492, %v380, 3e+38
      %v965 = vsel %vm493, %v383, 3e+38
      %v966 = vsel %vm494, %v388, 3e+38
      %v967 = vsel %vm495, %v391, 3e+38
      %v968 = vsel %vm496, %v396, 3e+38
      %v969 = vsel %vm497, %v399, 3e+38
      %v970 = vsel %vm498, %v404, 3e+38
      %v971 = vsel %vm499, %v407, 3e+38
      %972 = vmin.xlane.f32.xlu0 %v964
      %v973 = vpop.xlane.xlu0 %972
      %974 = vmin.xlane.f32.xlu0 %v965
      %v975 = vpop.xlane.xlu0 %974
      %976 = vmin.xlane.f32.xlu0 %v966
      %v977 = vpop.xlane.xlu0 %976
      %978 = vmin.xlane.f32.xlu0 %v967
      %v979 = vpop.xlane.xlu0 %978
      %980 = vmin.xlane.f32.xlu0 %v968
      %v981 = vpop.xlane.xlu0 %980
      %982 = vmin.xlane.f32.xlu0 %v969
      %v983 = vpop.xlane.xlu0 %982
      %984 = vmin.xlane.f32.xlu0 %v970
      %v985 = vpop.xlane.xlu0 %984
      %986 = vmin.xlane.f32.xlu0 %v971
      %v987 = vpop.xlane.xlu0 %986
      %v988 = vsub.f32 %v973, 0.05
      %v989 = vsub.f32 %v975, 0.05
      %v990 = vsub.f32 %v977, 0.05
      %v991 = vsub.f32 %v979, 0.05
      %v992 = vsub.f32 %v981, 0.05
      %v993 = vsub.f32 %v983, 0.05
      %v994 = vsub.f32 %v985, 0.05
      %v995 = vsub.f32 %v987, 0.05
      %vm996 = vcmp.gt.f32.partialorder %v380, %v988
      %vm997 = vcmp.gt.f32.partialorder %v383, %v989
      %vm998 = vcmp.gt.f32.partialorder %v388, %v990
      %vm999 = vcmp.gt.f32.partialorder %v391, %v991
      %vm1000 = vcmp.gt.f32.partialorder %v396, %v992
      %vm1001 = vcmp.gt.f32.partialorder %v399, %v993
      %vm1002 = vcmp.gt.f32.partialorder %v404, %v994
      %vm1003 = vcmp.gt.f32.partialorder %v407, %v995
      %vm1004 = vmand %vm500, %vm996
      %vm1005 = vmand %vm501, %vm997
      %vm1006 = vmand %vm502, %vm998
      %vm1007 = vmand %vm503, %vm999
      %vm1008 = vmand %vm504, %vm1000
      %vm1009 = vmand %vm505, %vm1001
      %vm1010 = vmand %vm506, %vm1002
      %vm1011 = vmand %vm507, %vm1003
      %v1012 = vsel %vm1004, 1, 0
      %v1013 = vsel %vm1005, 1, 0
      %v1014 = vsel %vm1006, 1, 0
      %v1015 = vsel %vm1007, 1, 0
      %v1016 = vsel %vm1008, 1, 0
      %v1017 = vsel %vm1009, 1, 0
      %v1018 = vsel %vm1010, 1, 0
      %v1019 = vsel %vm1011, 1, 0
      %v1020 = vcvt.s32.f32 %v1012
      %v1021 = vcvt.s32.f32 %v1013
      %v1022 = vcvt.s32.f32 %v1014
      %v1023 = vcvt.s32.f32 %v1015
      %v1024 = vcvt.s32.f32 %v1016
      %v1025 = vcvt.s32.f32 %v1017
      %v1026 = vcvt.s32.f32 %v1018
      %v1027 = vcvt.s32.f32 %v1019
      %1028 = vadd.xlane.f32.xlu0 %v1020
      %v1029 = vpop.xlane.xlu0 %1028
      %1030 = vadd.xlane.f32.xlu0 %v1021
      %v1031 = vpop.xlane.xlu0 %1030
      %1032 = vadd.xlane.f32.xlu0 %v1022
      %v1033 = vpop.xlane.xlu0 %1032
      %1034 = vadd.xlane.f32.xlu0 %v1023
      %v1035 = vpop.xlane.xlu0 %1034
      %1036 = vadd.xlane.f32.xlu0 %v1024
      %v1037 = vpop.xlane.xlu0 %1036
      %1038 = vadd.xlane.f32.xlu0 %v1025
      %v1039 = vpop.xlane.xlu0 %1038
      %1040 = vadd.xlane.f32.xlu0 %v1026
      %v1041 = vpop.xlane.xlu0 %1040
      %1042 = vadd.xlane.f32.xlu0 %v1027
      %v1043 = vpop.xlane.xlu0 %1042
      %v1044 = vsub.f32 %v380, %v956
      %v1045 = vsub.f32 %v383, %v957
      %v1046 = vsub.f32 %v388, %v958
      %v1047 = vsub.f32 %v391, %v959
      %v1048 = vsub.f32 %v396, %v960
      %v1049 = vsub.f32 %v399, %v961
      %v1050 = vsub.f32 %v404, %v962
      %v1051 = vsub.f32 %v407, %v963
      %v1052 = vmul.f32 %v1044, -10.0
      %v1053 = vmul.f32 %v1045, -10.0
      %v1054 = vmul.f32 %v1046, -10.0
      %v1055 = vmul.f32 %v1047, -10.0
      %v1056 = vmul.f32 %v1048, -10.0
      %v1057 = vmul.f32 %v1049, -10.0
      %v1058 = vmul.f32 %v1050, -10.0
      %v1059 = vmul.f32 %v1051, -10.0
      %v1060 = vmul.f32 %v1044, 40.0
      %v1061 = vmul.f32 %v1045, 40.0
      %v1062 = vmul.f32 %v1046, 40.0
      %v1063 = vmul.f32 %v1047, 40.0
      %v1064 = vmul.f32 %v1048, 40.0
      %v1065 = vmul.f32 %v1049, 40.0
      %v1066 = vmul.f32 %v1050, 40.0
      %v1067 = vmul.f32 %v1051, 40.0
      %v1068 = vsel %vm492, %v1052, %v1060
      %v1069 = vsel %vm493, %v1053, %v1061
      %v1070 = vsel %vm494, %v1054, %v1062
      %v1071 = vsel %vm495, %v1055, %v1063
      %v1072 = vsel %vm496, %v1056, %v1064
      %v1073 = vsel %vm497, %v1057, %v1065
      %v1074 = vsel %vm498, %v1058, %v1066
      %v1075 = vsel %vm499, %v1059, %v1067
      %v1076 = vmax.f32 %v1068, 0.0
      %v1077 = vmax.f32 %v1069, 0.0
      %v1078 = vmax.f32 %v1070, 0.0
      %v1079 = vmax.f32 %v1071, 0.0
      %v1080 = vmax.f32 %v1072, 0.0
      %v1081 = vmax.f32 %v1073, 0.0
      %v1082 = vmax.f32 %v1074, 0.0
      %v1083 = vmax.f32 %v1075, 0.0
      %v1084 = vand.u32 2147483647, %v1068
      %v1085 = vand.u32 2147483647, %v1069
      %v1086 = vand.u32 2147483647, %v1070
      %v1087 = vand.u32 2147483647, %v1071
      %v1088 = vand.u32 2147483647, %v1072
      %v1089 = vand.u32 2147483647, %v1073
      %v1090 = vand.u32 2147483647, %v1074
      %v1091 = vand.u32 2147483647, %v1075
      %v1092 = vsub.f32 0.0, %v1084
      %v1093 = vsub.f32 0.0, %v1085
      %v1094 = vsub.f32 0.0, %v1086
      %v1095 = vsub.f32 0.0, %v1087
      %v1096 = vsub.f32 0.0, %v1088
      %v1097 = vsub.f32 0.0, %v1089
      %v1098 = vsub.f32 0.0, %v1090
      %v1099 = vsub.f32 0.0, %v1091
      %v1100 = vmul.f32 %v1092, 1.442695
      %v1101 = vpow.pop %v1100
      %v1102 = vmul.f32 %v1093, 1.442695
      %v1103 = vpow.pop %v1102
      %v1104 = vmul.f32 %v1094, 1.442695
      %v1105 = vpow.pop %v1104
      %v1106 = vmul.f32 %v1095, 1.442695
      %v1107 = vpow.pop %v1106
      %v1108 = vmul.f32 %v1096, 1.442695
      %v1109 = vpow.pop %v1108
      %v1110 = vmul.f32 %v1097, 1.442695
      %v1111 = vpow.pop %v1110
      %v1112 = vmul.f32 %v1098, 1.442695
      %v1113 = vpow.pop %v1112
      %v1114 = vmul.f32 %v1099, 1.442695
      %v1115 = vpow.pop %v1114
      %v1116 = vadd.f32 %v1101, 1.0
      %v1117 = vlog2.pop %v1116
      %v1118 = vmul.f32 %v1117, 0.6931472
      %v1119 = vmul.f32 -0.5, %v1101
      %v1120 = vadd.f32 %v1119, 1.0
      %v1121 = vmul.f32 %v1120, %v1101
      %v1122 = vand.u32 2147483647, %v1101
      %vm1123 = vcmp.lt.f32.partialorder %v1122, 0.0004427343
      %v1124 = vsel %vm1123, %v1121, %v1118
      %v1125 = vadd.f32 %v1103, 1.0
      %v1126 = vlog2.pop %v1125
      %v1127 = vmul.f32 %v1126, 0.6931472
      %v1128 = vmul.f32 -0.5, %v1103
      %v1129 = vadd.f32 %v1128, 1.0
      %v1130 = vmul.f32 %v1129, %v1103
      %v1131 = vand.u32 2147483647, %v1103
      %vm1132 = vcmp.lt.f32.partialorder %v1131, 0.0004427343
      %v1133 = vsel %vm1132, %v1130, %v1127
      %v1134 = vadd.f32 %v1105, 1.0
      %v1135 = vlog2.pop %v1134
      %v1136 = vmul.f32 %v1135, 0.6931472
      %v1137 = vmul.f32 -0.5, %v1105
      %v1138 = vadd.f32 %v1137, 1.0
      %v1139 = vmul.f32 %v1138, %v1105
      %v1140 = vand.u32 2147483647, %v1105
      %vm1141 = vcmp.lt.f32.partialorder %v1140, 0.0004427343
      %v1142 = vsel %vm1141, %v1139, %v1136
      %v1143 = vadd.f32 %v1107, 1.0
      %v1144 = vlog2.pop %v1143
      %v1145 = vmul.f32 %v1144, 0.6931472
      %v1146 = vmul.f32 -0.5, %v1107
      %v1147 = vadd.f32 %v1146, 1.0
      %v1148 = vmul.f32 %v1147, %v1107
      %v1149 = vand.u32 2147483647, %v1107
      %vm1150 = vcmp.lt.f32.partialorder %v1149, 0.0004427343
      %v1151 = vsel %vm1150, %v1148, %v1145
      %v1152 = vadd.f32 %v1109, 1.0
      %v1153 = vlog2.pop %v1152
      %v1154 = vmul.f32 %v1153, 0.6931472
      %v1155 = vmul.f32 -0.5, %v1109
      %v1156 = vadd.f32 %v1155, 1.0
      %v1157 = vmul.f32 %v1156, %v1109
      %v1158 = vand.u32 2147483647, %v1109
      %vm1159 = vcmp.lt.f32.partialorder %v1158, 0.0004427343
      %v1160 = vsel %vm1159, %v1157, %v1154
      %v1161 = vadd.f32 %v1111, 1.0
      %v1162 = vlog2.pop %v1161
      %v1163 = vmul.f32 %v1162, 0.6931472
      %v1164 = vmul.f32 -0.5, %v1111
      %v1165 = vadd.f32 %v1164, 1.0
      %v1166 = vmul.f32 %v1165, %v1111
      %v1167 = vand.u32 2147483647, %v1111
      %vm1168 = vcmp.lt.f32.partialorder %v1167, 0.0004427343
      %v1169 = vsel %vm1168, %v1166, %v1163
      %v1170 = vadd.f32 %v1113, 1.0
      %v1171 = vlog2.pop %v1170
      %v1172 = vmul.f32 %v1171, 0.6931472
      %v1173 = vmul.f32 -0.5, %v1113
      %v1174 = vadd.f32 %v1173, 1.0
      %v1175 = vmul.f32 %v1174, %v1113
      %v1176 = vand.u32 2147483647, %v1113
      %vm1177 = vcmp.lt.f32.partialorder %v1176, 0.0004427343
      %v1178 = vsel %vm1177, %v1175, %v1172
      %v1179 = vadd.f32 %v1115, 1.0
      %v1180 = vlog2.pop %v1179
      %v1181 = vmul.f32 %v1180, 0.6931472
      %v1182 = vmul.f32 -0.5, %v1115
      %v1183 = vadd.f32 %v1182, 1.0
      %v1184 = vmul.f32 %v1183, %v1115
      %v1185 = vand.u32 2147483647, %v1115
      %vm1186 = vcmp.lt.f32.partialorder %v1185, 0.0004427343
      %v1187 = vsel %vm1186, %v1184, %v1181
      %v1188 = vadd.f32 %v1076, %v1124
      %v1189 = vadd.f32 %v1077, %v1133
      %v1190 = vadd.f32 %v1078, %v1142
      %v1191 = vadd.f32 %v1079, %v1151
      %v1192 = vadd.f32 %v1080, %v1160
      %v1193 = vadd.f32 %v1081, %v1169
      %v1194 = vadd.f32 %v1082, %v1178
      %v1195 = vadd.f32 %v1083, %v1187
      %v1196 = vsel %vm492, %v1188, 0.0
      %v1197 = vsel %vm493, %v1189, 0.0
      %v1198 = vsel %vm494, %v1190, 0.0
      %v1199 = vsel %vm495, %v1191, 0.0
      %v1200 = vsel %vm496, %v1192, 0.0
      %v1201 = vsel %vm497, %v1193, 0.0
      %v1202 = vsel %vm498, %v1194, 0.0
      %v1203 = vsel %vm499, %v1195, 0.0
      %1204 = vadd.xlane.f32.xlu0 %v1196
      %v1205 = vpop.xlane.xlu0 %1204
      %1206 = vadd.xlane.f32.xlu0 %v1197
      %v1207 = vpop.xlane.xlu0 %1206
      %1208 = vadd.xlane.f32.xlu0 %v1198
      %v1209 = vpop.xlane.xlu0 %1208
      %1210 = vadd.xlane.f32.xlu0 %v1199
      %v1211 = vpop.xlane.xlu0 %1210
      %1212 = vadd.xlane.f32.xlu0 %v1200
      %v1213 = vpop.xlane.xlu0 %1212
      %1214 = vadd.xlane.f32.xlu0 %v1201
      %v1215 = vpop.xlane.xlu0 %1214
      %1216 = vadd.xlane.f32.xlu0 %v1202
      %v1217 = vpop.xlane.xlu0 %1216
      %1218 = vadd.xlane.f32.xlu0 %v1203
      %v1219 = vpop.xlane.xlu0 %1218
      %v1220 = vsel %vm1004, %v1188, 0.0
      %v1221 = vsel %vm1005, %v1189, 0.0
      %v1222 = vsel %vm1006, %v1190, 0.0
      %v1223 = vsel %vm1007, %v1191, 0.0
      %v1224 = vsel %vm1008, %v1192, 0.0
      %v1225 = vsel %vm1009, %v1193, 0.0
      %v1226 = vsel %vm1010, %v1194, 0.0
      %v1227 = vsel %vm1011, %v1195, 0.0
      %1228 = vadd.xlane.f32.xlu0 %v1220
      %v1229 = vpop.xlane.xlu0 %1228
      %1230 = vadd.xlane.f32.xlu0 %v1221
      %v1231 = vpop.xlane.xlu0 %1230
      %1232 = vadd.xlane.f32.xlu0 %v1222
      %v1233 = vpop.xlane.xlu0 %1232
      %1234 = vadd.xlane.f32.xlu0 %v1223
      %v1235 = vpop.xlane.xlu0 %1234
      %1236 = vadd.xlane.f32.xlu0 %v1224
      %v1237 = vpop.xlane.xlu0 %1236
      %1238 = vadd.xlane.f32.xlu0 %v1225
      %v1239 = vpop.xlane.xlu0 %1238
      %1240 = vadd.xlane.f32.xlu0 %v1226
      %v1241 = vpop.xlane.xlu0 %1240
      %1242 = vadd.xlane.f32.xlu0 %v1227
      %v1243 = vpop.xlane.xlu0 %1242
      %v1244 = vmul.f32 %v1205, 0.2
      %v1245 = vmul.f32 %v1207, 0.2
      %v1246 = vmul.f32 %v1209, 0.2
      %v1247 = vmul.f32 %v1211, 0.2
      %v1248 = vmul.f32 %v1213, 0.2
      %v1249 = vmul.f32 %v1215, 0.2
      %v1250 = vmul.f32 %v1217, 0.2
      %v1251 = vmul.f32 %v1219, 0.2
      %v1252 = vmul.f32 %v1244, %v684
      %v1253 = vmul.f32 %v1245, %v686
      %v1254 = vmul.f32 %v1246, %v688
      %v1255 = vmul.f32 %v1247, %v690
      %v1256 = vmul.f32 %v1248, %v692
      %v1257 = vmul.f32 %v1249, %v694
      %v1258 = vmul.f32 %v1250, %v696
      %v1259 = vmul.f32 %v1251, %v698
      %v1260 = vmul.f32 %v1229, 0.05
      %v1261 = vmul.f32 %v1231, 0.05
      %v1262 = vmul.f32 %v1233, 0.05
      %v1263 = vmul.f32 %v1235, 0.05
      %v1264 = vmul.f32 %v1237, 0.05
      %v1265 = vmul.f32 %v1239, 0.05
      %v1266 = vmul.f32 %v1241, 0.05
      %v1267 = vmul.f32 %v1243, 0.05
      %v1268 = vmax.f32 %v1029, 1.0
      %v1269 = vmax.f32 %v1031, 1.0
      %v1270 = vmax.f32 %v1033, 1.0
      %v1271 = vmax.f32 %v1035, 1.0
      %v1272 = vmax.f32 %v1037, 1.0
      %v1273 = vmax.f32 %v1039, 1.0
      %v1274 = vmax.f32 %v1041, 1.0
      %v1275 = vmax.f32 %v1043, 1.0
      %v1276 = vrcp.pop %v1268
      %v1277 = vmul.f32 %v1260, %v1276
      %v1278 = vrcp.pop %v1269
      %v1279 = vmul.f32 %v1261, %v1278
      %v1280 = vrcp.pop %v1270
      %v1281 = vmul.f32 %v1262, %v1280
      %v1282 = vrcp.pop %v1271
      %v1283 = vmul.f32 %v1263, %v1282
      %v1284 = vrcp.pop %v1272
      %v1285 = vmul.f32 %v1264, %v1284
      %v1286 = vrcp.pop %v1273
      %v1287 = vmul.f32 %v1265, %v1286
      %v1288 = vrcp.pop %v1274
      %v1289 = vmul.f32 %v1266, %v1288
      %v1290 = vrcp.pop %v1275
      %v1291 = vmul.f32 %v1267, %v1290
      %vm1292 = vcmp.ge.f32.partialorder %v1029, 1.0
      %vm1293 = vcmp.ge.f32.partialorder %v1031, 1.0
      %vm1294 = vcmp.ge.f32.partialorder %v1033, 1.0
      %vm1295 = vcmp.ge.f32.partialorder %v1035, 1.0
      %vm1296 = vcmp.ge.f32.partialorder %v1037, 1.0
      %vm1297 = vcmp.ge.f32.partialorder %v1039, 1.0
      %vm1298 = vcmp.ge.f32.partialorder %v1041, 1.0
      %vm1299 = vcmp.ge.f32.partialorder %v1043, 1.0
      %v1300 = vadd.f32 %v1252, %v1277
      %v1301 = vadd.f32 %v1253, %v1279
      %v1302 = vadd.f32 %v1254, %v1281
      %v1303 = vadd.f32 %v1255, %v1283
      %v1304 = vadd.f32 %v1256, %v1285
      %v1305 = vadd.f32 %v1257, %v1287
      %v1306 = vadd.f32 %v1258, %v1289
      %v1307 = vadd.f32 %v1259, %v1291
      %v1308 = vsel %vm1292, %v1300, 0.0
      %v1309 = vsel %vm1293, %v1301, 0.0
      %v1310 = vsel %vm1294, %v1302, 0.0
      %v1311 = vsel %vm1295, %v1303, 0.0
      %v1312 = vsel %vm1296, %v1304, 0.0
      %v1313 = vsel %vm1297, %v1305, 0.0
      %v1314 = vsel %vm1298, %v1306, 0.0
      %v1315 = vsel %vm1299, %v1307, 0.0
      %v1316 = vsel %vm1292, 0.0, 1.0
      %v1317 = vsel %vm1293, 0.0, 1.0
      %v1318 = vsel %vm1294, 0.0, 1.0
      %v1319 = vsel %vm1295, 0.0, 1.0
      %v1320 = vsel %vm1296, 0.0, 1.0
      %v1321 = vsel %vm1297, 0.0, 1.0
      %v1322 = vsel %vm1298, 0.0, 1.0
      %v1323 = vsel %vm1299, 0.0, 1.0
      %vm1324 = vcmp.eq.s32.totalorder %v475, 0
      %v1325 = vsel %vm1324, %v1308, 0.0
      %v1326 = vsel %vm1324, %v1309, 0.0
      %v1327 = vsel %vm1324, %v1310, 0.0
      %v1328 = vsel %vm1324, %v1311, 0.0
      %v1329 = vsel %vm1324, %v1312, 0.0
      %v1330 = vsel %vm1324, %v1313, 0.0
      %v1331 = vsel %vm1324, %v1314, 0.0
      %v1332 = vsel %vm1324, %v1315, 0.0
      %vm1333 = vcmp.eq.s32.totalorder %v475, 1
      %v1334 = vsel %vm1333, %v1316, %v1325
      %v1335 = vsel %vm1333, %v1317, %v1326
      %v1336 = vsel %vm1333, %v1318, %v1327
      %v1337 = vsel %vm1333, %v1319, %v1328
      %v1338 = vsel %vm1333, %v1320, %v1329
      %v1339 = vsel %vm1333, %v1321, %v1330
      %v1340 = vsel %vm1333, %v1322, %v1331
      %v1341 = vsel %vm1333, %v1323, %v1332
      %vm1342 = vcmp.eq.s32.totalorder %v475, 2
      %v1343 = vsel %vm1342, %v589, %v1334
      %v1344 = vsel %vm1342, %v591, %v1335
      %v1345 = vsel %vm1342, %v593, %v1336
      %v1346 = vsel %vm1342, %v595, %v1337
      %v1347 = vsel %vm1342, %v597, %v1338
      %v1348 = vsel %vm1342, %v599, %v1339
      %v1349 = vsel %vm1342, %v601, %v1340
      %v1350 = vsel %vm1342, %v603, %v1341
      %vm1351 = vcmp.eq.s32.totalorder %v475, 3
      %v1352 = vsel %vm1351, %v541, %v1343
      %v1353 = vsel %vm1351, %v543, %v1344
      %v1354 = vsel %vm1351, %v545, %v1345
      %v1355 = vsel %vm1351, %v547, %v1346
      %v1356 = vsel %vm1351, %v549, %v1347
      %v1357 = vsel %vm1351, %v551, %v1348
      %v1358 = vsel %vm1351, %v553, %v1349
      %v1359 = vsel %vm1351, %v555, %v1350
      %vm1360 = vcmp.eq.s32.totalorder %v475, 4
      %v1361 = vsel %vm1360, %v605, %v1352
      %v1362 = vsel %vm1360, %v607, %v1353
      %v1363 = vsel %vm1360, %v609, %v1354
      %v1364 = vsel %vm1360, %v611, %v1355
      %v1365 = vsel %vm1360, %v613, %v1356
      %v1366 = vsel %vm1360, %v615, %v1357
      %v1367 = vsel %vm1360, %v617, %v1358
      %v1368 = vsel %vm1360, %v619, %v1359
      %vm1369 = vcmp.eq.s32.totalorder %v475, 5
      %v1370 = vsel %vm1369, %v573, %v1361
      %v1371 = vsel %vm1369, %v575, %v1362
      %v1372 = vsel %vm1369, %v577, %v1363
      %v1373 = vsel %vm1369, %v579, %v1364
      %v1374 = vsel %vm1369, %v581, %v1365
      %v1375 = vsel %vm1369, %v583, %v1366
      %v1376 = vsel %vm1369, %v585, %v1367
      %v1377 = vsel %vm1369, %v587, %v1368
      %vm1378 = vcmask 48128
      %1379 = vst.msk [vmem:[%s221] sm:$0xff] %vm1378, %v1370
      %1380 = vst.msk [vmem:[%s221 + $0x8] sm:$0xff] %vm1378, %v1371
      %1381 = vst.msk [vmem:[%s221 + $0x10] sm:$0xff] %vm1378, %v1372
      %1382 = vst.msk [vmem:[%s221 + $0x18] sm:$0xff] %vm1378, %v1373
      %1383 = vst.msk [vmem:[%s221 + $0x20] sm:$0xff] %vm1378, %v1374
      %1384 = vst.msk [vmem:[%s221 + $0x28] sm:$0xff] %vm1378, %v1375
      %1385 = vst.msk [vmem:[%s221 + $0x30] sm:$0xff] %vm1378, %v1376
      %1386 = vst.msk [vmem:[%s221 + $0x38] sm:$0xff] %vm1378, %v1377
      %s1387 = smul.u32 8, %s15
      %p1388 = scmp.lt.s32.totalorder %s1387, 15
      %s1389 = scalar_select %p1388, %s1387, 15
      %s1390 = smul.addr %s1389, 8
      %s1391 = scalar_lea.vmem %s4, %s1390
      // Predicated region
      $region37: #{tpu_custom_call.1} parent=35 // pred_check
        %p1392 = pneg %p127
      $region38: #{tpu_custom_call.1} parent=35 // pred_check_branch
        %1394 = sbr.rel (%p1392) target = $region40
      $region39: #{tpu_custom_call.1} parent=35 // pred_region
        %s1395 = smul.u32 8, %s15
      $region40: #{tpu_custom_call.1} parent=35 // pred_fallthru
        _
    $region36: #{tpu_custom_call.1} parent=5 // pred_fallthru
      _
    %p1396 = scmp.le.s32.totalorder 2, %s10
    // Predicated region
    $region41: #{tpu_custom_call.1} parent=5 // pred_check
      %p1397 = pneg %p1396
    $region42: #{tpu_custom_call.1} parent=5 // pred_check_branch
      %1399 = sbr.rel (%p1397) target = $region44
    $region43: #{tpu_custom_call.1} parent=5 // pred_region
      %s1400 = ssub.s32 %s10, 2
      // Predicated region
      $region45: #{tpu_custom_call.1} parent=43 // pred_check
        %p1401 = pneg %p133
      $region46: #{tpu_custom_call.1} parent=43 // pred_check_branch
        %1403 = sbr.rel (%p1401) target = $region48
      $region47: #{tpu_custom_call.1} parent=43 // pred_region
        %s1404 = smul.u32 8, %s16
        %p1405 = scmp.lt.s32.totalorder %s1404, 15
        %s1406 = scalar_select %p1405, %s1404, 15
        %s1407 = smul.addr %s1406, 8
        %s1408 = scalar_lea.vmem %s4, %s1407
      $region48: #{tpu_custom_call.1} parent=43 // pred_fallthru
        _
    $region44: #{tpu_custom_call.1} parent=5 // pred_fallthru
      _
  $region6: #{tpu_custom_call.1} parent=0 // loop_footer
    %s14 = sadd.s32 1, %s10
  $region7: #{tpu_custom_call.1} parent=0 // loop_footer_branch
    %9 = sbr.rel target = $region3
  $region8: #{tpu_custom_call.1} parent=0 // loop_exit
    _

</llo_original>
